<compile_context>
chip_gen: v6e
topology: v6e:2x2x1
jax: 0.10.0
libtpu: 0.0.40
codegen_flags: <defaults>
</compile_context>

<pallas_src>
import functools
import jax
import jax.numpy as jnp
from jax.experimental import pallas as pl
from jax.experimental.pallas import tpu as pltpu


NEG_SLOPE = 0.01  # torch.nn.LeakyReLU default
EPS = 1e-5        # torch BatchNorm2d default


def _leaky(x):
    return jnp.where(x > 0, x, NEG_SLOPE * x)


def _gcd(a, b):
    while b:
        a, b = b, a % b
    return a


def _pick_batch_tile(B):
    """Images per grid step: largest divisor of B <= 8; prefer an even grid length (so both
    v7x TensorCores stay busy under 'parallel') whenever B allows a Bt > 1 with even B//Bt."""
    divs = [d for d in range(1, min(B, 8) + 1) if B % d == 0]
    even_grid = [d for d in divs if d > 1 and (B // d) % 2 == 0]
    return max(even_grid) if even_grid else max(divs)


def fused_conv_bn_se_kernel(x_ref, w_ref, aux_ref, w1_ref, w2_ref, o_ref,
                            xext_ref, slab_ref, *, H, W, K, Cred, Bt):
    """Bt images per grid step, channels-first, M = H*W on the lane axis.

    x_ref   : (Bt, Cin, M)      raw flattened images (f32; cast to bf16 in VMEM)
    w_ref   : (Cout, K*K*Cin)   dense grouped-conv weight, shuffle folded, tap-major (bf16)
    aux_ref : (Cout, 8)         packed per-channel params [s1, sh1, s2, sh2, fc2_b, fc1_b, 0, 0]
    w1_ref  : (Cred, Cout)      SE fc1 weight (f32)
    w2_ref  : (Cout, Cred)      SE fc2 weight (f32)
    o_ref   : (Bt, Cout, M)     NCHW-flat output (lane-dense)
    xext_ref: (Cin, M_ext)      scratch: one image with 'same' padding folded into the flat axis
    slab_ref: (K*K*Cin, Bt*M)   scratch: stacked shifted taps (im2col lives only in VMEM)
    """
    M = H * W
    pad = K // 2
    off = pad * (W + 1)
    Cin = x_ref.shape[1]
    Cout = o_ref.shape[1]
    M_ext = xext_ref.shape[1]

    # Horizontal 'same'-padding validity masks (only the 2*K taps with dw != 0 need one);
    # hoisted out of the per-image loop so each mask is built once.
    col = jax.lax.broadcasted_iota(jnp.int32, (1, M), 1) % W
    col_valid = {}
    for kw in range(K):
        dw = kw - pad
        if dw != 0:
            col_valid[kw] = jnp.logical_and(col + dw >= 0, col + dw < W)

    # Zero the vertical-padding edges of the per-image extended slab (never overwritten below).
    if off > 0:
        xext_ref[:, 0:off] = jnp.zeros((Cin, off), jnp.bfloat16)
        xext_ref[:, off + M:M_ext] = jnp.zeros((Cin, M_ext - off - M), jnp.bfloat16)

    # Build the (K*K*Cin, Bt*M) bf16 stacked slab: all K*K taps of all Bt images. Each tap is
    # a statically-shifted (lane-rotated) copy of the image; the rotations happen exactly once
    # here, off the vld/vst critical path, and the whole grouped conv collapses into ONE dot.
    for b in range(Bt):
        xext_ref[:, off:off + M] = x_ref[b].astype(jnp.bfloat16)
        for kh in range(K):
            for kw in range(K):
                t = kh * K + kw
                start = kh * W + kw                                   # static lane offset
                tap = xext_ref[:, start:start + M]                    # (Cin, M) bf16
                if kw != pad:
                    # Mask columns where 'same' padding contributes zeros (these lanes would
                    # otherwise pick up row-wrapped values from the flat layout).
                    tap = jnp.where(col_valid[kw], tap, jnp.bfloat16(0))
                slab_ref[t * Cin:(t + 1) * Cin, b * M:(b + 1) * M] = tap

    # One MXU dot for the whole (shuffled, grouped, 'same'-padded) conv, f32 accumulation.
    acc = jnp.dot(w_ref[...], slab_ref[...],
                  preferred_element_type=jnp.float32)                 # (Cout, Bt*M)

    aux = aux_ref[...]
    s1, sh1 = aux[:, 0:1], aux[:, 1:2]
    s2, sh2 = aux[:, 2:3], aux[:, 3:4]
    b2 = aux[:, 4:5]                                                  # (Cout, 1)
    b1 = aux[:Cred, 5:6]                                              # (Cred, 1)

    # Conv bias + BatchNorm1 (eval) folded into scale/shift, then LeakyReLU.
    y = _leaky(acc * s1 + sh1)                                        # (Cout, Bt*M) f32
    # TODO(synk): Dropout(p=0.3) is identity in eval mode; training-mode stochastic dropout
    #             is intentionally not reproduced.

    # --- Squeeze-and-Excitation, batched over the Bt images (fc matmuls have N=Bt, not 1) ---
    pooled = jnp.concatenate(
        [jnp.mean(y[:, b * M:(b + 1) * M], axis=1, keepdims=True) for b in range(Bt)],
        axis=1)                                                       # (Cout, Bt)
    h1 = _leaky(jnp.dot(w1_ref[...], pooled,
                        preferred_element_type=jnp.float32) + b1)     # (Cred, Bt)
    gate = jax.nn.sigmoid(jnp.dot(w2_ref[...], h1,
                                  preferred_element_type=jnp.float32) + b2)  # (Cout, Bt)

    # Channel gate + BatchNorm2 (eval) + LeakyReLU; per-image lane-dense stores (M % 128 == 0).
    for b in range(Bt):
        yb = y[:, b * M:(b + 1) * M]
        ob = _leaky(yb * gate[:, b:b + 1] * s2 + sh2)
        o_ref[b] = ob.astype(o_ref.dtype)


def prepare_params(params, *, kernel_size=3, groups=8):
    """One-time weight-side preprocessing (call at parameter-load time, NOT per forward):
    folds the channel shuffle into the conv weight as an input-channel permutation, builds the
    dense block-diagonal grouped weight in single-dot (Cout, K*K*Cin) layout, folds conv bias +
    eval BatchNorms into per-channel scale/shift, and packs per-channel vectors into one aux."""
    K = kernel_size
    assert K % 2 == 1, "'same' padding fold assumes odd kernel_size"
    Cout, in_pg = params["conv_w"].shape[0], params["conv_w"].shape[1]
    Cin = in_pg * groups
    out_pg = Cout // groups

    # Dense block-diagonal grouped-conv weight, indexed by *shuffled* input channel.
    w = params["conv_w"].astype(jnp.float32)                          # (Cout, Cin/g, K, K)
    W_s = jnp.zeros((K, K, Cin, Cout), jnp.float32)
    for g in range(groups):
        blk = jnp.transpose(w[g * out_pg:(g + 1) * out_pg], (2, 3, 1, 0))   # (K,K,in_pg,out_pg)
        W_s = W_s.at[:, :, g * in_pg:(g + 1) * in_pg,
                     g * out_pg:(g + 1) * out_pg].set(blk)
    # Fold the channel shuffle in as an input-channel permutation (x is never shuffled).
    g_sh = _gcd(Cin, Cout)
    c_s = jnp.arange(Cin)
    sigma = (c_s % g_sh) * (Cin // g_sh) + c_s // g_sh                # shuffled c_s reads x[sigma[c_s]]
    W_f = W_s[:, :, jnp.argsort(sigma), :]                            # re-expressed in original channels
    # (Cout, K*K*Cin) tap-major / Cin-minor — matches the slab layout built in-kernel.
    # NOTE(v5e): K*K*Cin = 144 spans two MXU passes (128+16) on the 128-wide v5e MXU; keeping
    # taps contiguous makes the remainder a single 16-row tail tile.
    w_flat = jnp.transpose(W_f, (3, 0, 1, 2)).reshape(Cout, K * K * Cin).astype(jnp.bfloat16)

    # Fold conv bias + eval BatchNorms into scale/shift; pack all per-channel vectors.
    s1 = params["bn1_g"] / jnp.sqrt(params["bn1_v"] + EPS)
    sh1 = params["bn1_b"] + s1 * (params["conv_b"] - params["bn1_m"])
    s2 = params["bn2_g"] / jnp.sqrt(params["bn2_v"] + EPS)
    sh2 = params["bn2_b"] - s2 * params["bn2_m"]
    Cred = params["fc1_w"].shape[0]
    aux = jnp.zeros((Cout, 8), jnp.float32)
    aux = aux.at[:, 0].set(s1).at[:, 1].set(sh1).at[:, 2].set(s2).at[:, 3].set(sh2)
    aux = aux.at[:, 4].set(params["fc2_b"]).at[:Cred, 5].set(params["fc1_b"])

    return {
        "w_flat": w_flat,                                   # (Cout, K*K*Cin) bf16
        "aux": aux,                                         # (Cout, 8) f32
        "fc1_w": params["fc1_w"].astype(jnp.float32),       # (Cred, Cout)
        "fc2_w": params["fc2_w"].astype(jnp.float32),       # (Cout, Cred)
    }


def conv2d_batchnorm_forward(x_nchw, prep, *, batch_tile=None, out_dtype=jnp.bfloat16):
    """Module forward. x_nchw: (B, Cin, H, W) float32, prep from prepare_params().
    Returns (B, Cout, H, W) in out_dtype (bf16 by default to halve HBM write traffic)."""
    B, Cin, H, W = x_nchw.shape
    Cout, KKC = prep["w_flat"].shape
    K = int(round((KKC // Cin) ** 0.5))
    Cred = prep["fc1_w"].shape[0]
    M = H * W
    M_ext = M + (K - 1) * (W + 1)
    Bt = _pick_batch_tile(B) if batch_tile is None else batch_tile
    assert B % Bt == 0

    # Pure reshape only (no HBM padding/cast pass): the kernel reads raw f32 and casts in VMEM.
    x_flat = x_nchw.reshape(B, Cin, M)

    kernel = functools.partial(fused_conv_bn_se_kernel, H=H, W=W, K=K, Cred=Cred, Bt=Bt)

    # NOTE(VMEM scaling): per-step VMEM here is ~0.3 MiB, far below any limit. For large H*W,
    # add an M-tiling grid axis with a two-phase SE (tile-wise pool accumulate, then gate) and
    # set pltpu.CompilerParams(vmem_limit_bytes=...) explicitly; size against v7x's 64 MiB
    # physical (32 MiB scoped default) and v5e's 16 MiB scoped default, not v6e's 128 MiB.
    out = pl.pallas_call(
        kernel,
        out_shape=jax.ShapeDtypeStruct((B, Cout, M), out_dtype),
        grid_spec=pltpu.PrefetchScalarGridSpec(
            num_scalar_prefetch=0,
            grid=(B // Bt,),
            in_specs=[
                pl.BlockSpec((Bt, Cin, M), lambda i: (i, 0, 0)),
                pl.BlockSpec((Cout, KKC), lambda i: (0, 0)),
                pl.BlockSpec((Cout, 8), lambda i: (0, 0)),
                pl.BlockSpec((Cred, Cout), lambda i: (0, 0)),
                pl.BlockSpec((Cout, Cred), lambda i: (0, 0)),
            ],
            out_specs=pl.BlockSpec((Bt, Cout, M), lambda i: (i, 0, 0)),
            scratch_shapes=[
                pltpu.VMEM((Cin, M_ext), jnp.bfloat16),          # per-image padded flat image
                pltpu.VMEM((K * K * Cin, Bt * M), jnp.bfloat16),  # stacked single-dot slab
            ],
        ),
        compiler_params=pltpu.CompilerParams(
            dimension_semantics=("parallel",),
        ),
    )(x_flat, prep["w_flat"], prep["aux"], prep["fc1_w"], prep["fc2_w"])

    # Output is already NCHW-flat and lane-dense -> pure reshape, no transpose.
    return out.reshape(B, Cout, H, W)


def reference_forward(x, p, *, kernel_size=3, groups=8):
    """Pure-JAX (f32) reference of the module forward, for a sanity check."""
    B, Cin, H, W = x.shape
    g = _gcd(Cin, p["conv_w"].shape[0])
    xs = x.reshape(B, g, Cin // g, H, W)
    xs = jnp.transpose(xs, (0, 2, 1, 3, 4)).reshape(B, Cin, H, W)      # channel shuffle
    conv = jax.lax.conv_general_dilated(
        xs, p["conv_w"], window_strides=(1, 1), padding="SAME",
        dimension_numbers=("NCHW", "OIHW", "NCHW"),
        feature_group_count=groups) + p["conv_b"][None, :, None, None]

    def bn(z, gmm, bta, mean, var):
        return ((z - mean[None, :, None, None])
                / jnp.sqrt(var + EPS)[None, :, None, None]
                * gmm[None, :, None, None] + bta[None, :, None, None])

    y = _leaky(bn(conv, p["bn1_g"], p["bn1_b"], p["bn1_m"], p["bn1_v"]))
    pooled = y.mean(axis=(2, 3))                                       # (B, Cout)
    h = _leaky(pooled @ p["fc1_w"].T + p["fc1_b"])
    gate = jax.nn.sigmoid(h @ p["fc2_w"].T + p["fc2_b"])
    out = y * gate[:, :, None, None]
    out = bn(out, p["bn2_g"], p["bn2_b"], p["bn2_m"], p["bn2_v"])
    return _leaky(out)


def init_params(key, Cin, Cout, K=3, groups=8):
    Cred = Cout // 8
    ks = jax.random.split(key, 12)
    return {
        "conv_w": 0.1 * jax.random.normal(ks[0], (Cout, Cin // groups, K, K), jnp.float32),
        "conv_b": 0.1 * jax.random.normal(ks[1], (Cout,), jnp.float32),
        "bn1_g": 1.0 + 0.1 * jax.random.normal(ks[2], (Cout,), jnp.float32),
        "bn1_b": 0.1 * jax.random.normal(ks[3], (Cout,), jnp.float32),
        "bn1_m": 0.1 * jax.random.normal(ks[4], (Cout,), jnp.float32),
        "bn1_v": jax.random.uniform(ks[5], (Cout,), jnp.float32, 0.5, 1.5),
        "fc1_w": 0.1 * jax.random.normal(ks[6], (Cred, Cout), jnp.float32),
        "fc1_b": 0.1 * jax.random.normal(ks[7], (Cred,), jnp.float32),
        "fc2_w": 0.1 * jax.random.normal(ks[8], (Cout, Cred), jnp.float32),
        "fc2_b": 0.1 * jax.random.normal(ks[9], (Cout,), jnp.float32),
        "bn2_g": 1.0 + 0.1 * jax.random.normal(ks[10], (Cout,), jnp.float32),
        "bn2_b": 0.1 * jax.random.normal(ks[11], (Cout,), jnp.float32),
        "bn2_m": jnp.zeros((Cout,), jnp.float32),
        "bn2_v": jnp.ones((Cout,), jnp.float32),
    }


if __name__ == "__main__":
    B, Cin, Cout, H, W = 2, 16, 24, 16, 16   # gcd(16,24)=8 -> non-trivial channel shuffle
    key = jax.random.PRNGKey(0)
    kx, kp = jax.random.split(key)
    x = jax.random.normal(kx, (B, Cin, H, W), jnp.float32)   # NCHW, as in PyTorch
    params = init_params(kp, Cin, Cout)

    prep = prepare_params(params, kernel_size=3, groups=8)   # one-time, outside the forward
    fwd = jax.jit(conv2d_batchnorm_forward)
    y = fwd(x, prep)
    jax.block_until_ready(y)
    assert y.shape == (B, Cout, H, W), y.shape
    assert y.dtype == jnp.bfloat16, y.dtype

    # Sanity check against a pure-JAX f32 reference (loose tol: bf16 MXU operands + bf16 output).
    ref = reference_forward(x, params)
    err = float(jnp.max(jnp.abs(y.astype(jnp.float32) - ref)))
    assert err < 1e-1, f"max abs error vs reference: {err}"
    print("KERNEL_OK")
</pallas_src>

<mosaic_0001>
module attributes {stable_mosaic.version = 11 : i64} {
  func.func @fused_conv_bn_se_kernel(%arg0: i32, %arg1: memref<2x16x256xf32, #tpu.memory_space<vmem>>, %arg2: memref<24x144xbf16, #tpu.memory_space<vmem>>, %arg3: memref<24x8xf32, #tpu.memory_space<vmem>>, %arg4: memref<3x24xf32, #tpu.memory_space<vmem>>, %arg5: memref<24x3xf32, #tpu.memory_space<vmem>>, %arg6: memref<2x24x256xbf16, #tpu.memory_space<vmem>>, %arg7: memref<16x290xbf16, #tpu.memory_space<vmem>>, %arg8: memref<144x512xbf16, #tpu.memory_space<vmem>>) attributes {dimension_semantics = [#tpu.dimension_semantics<parallel>], iteration_bounds = array<i64: 1>, scalar_prefetch = 0 : i64, scratch_operands = 2 : i64, tpu.core_type = #tpu.core_type<tc>, window_params = [{transform_indices = @transform_0, window_bounds = array<i64: 2, 16, 256>}, {pipeline_mode = #tpu.pipeline_mode<synchronous>, transform_indices = @transform_1, window_bounds = array<i64: 24, 144>}, {pipeline_mode = #tpu.pipeline_mode<synchronous>, transform_indices = @transform_2, window_bounds = array<i64: 24, 8>}, {pipeline_mode = #tpu.pipeline_mode<synchronous>, transform_indices = @transform_3, window_bounds = array<i64: 3, 24>}, {pipeline_mode = #tpu.pipeline_mode<synchronous>, transform_indices = @transform_4, window_bounds = array<i64: 24, 3>}, {transform_indices = @transform_5, window_bounds = array<i64: 2, 24, 256>}]} {
    %0 = tpu.iota {dimensions = array<i32: 1>} : vector<1x256xi32>
    %c16_i32 = arith.constant 16 : i32
    %c0_i32 = arith.constant 0 : i32
    %1 = arith.cmpi eq, %c16_i32, %c0_i32 : i32
    %c1_i32 = arith.constant 1 : i32
    %2 = arith.select %1, %c1_i32, %c16_i32 : i32
    %3 = vector.broadcast %2 : i32 to vector<1x256xi32>
    %4 = arith.remsi %0, %3 : vector<1x256xi32>
    %c0_i32_0 = arith.constant 0 : i32
    %5 = vector.broadcast %c0_i32_0 : i32 to vector<1x256xi32>
    %6 = arith.cmpi ne, %4, %5 : vector<1x256xi32>
    %c0_i32_1 = arith.constant 0 : i32
    %7 = vector.broadcast %c0_i32_1 : i32 to vector<1x256xi32>
    %8 = arith.cmpi slt, %4, %7 : vector<1x256xi32>
    %c0_i32_2 = arith.constant 0 : i32
    %9 = arith.cmpi slt, %2, %c0_i32_2 : i32
    %10 = vector.broadcast %9 : i1 to vector<1x256xi1>
    %11 = vector.broadcast %10 : vector<1x256xi1> to vector<1x256xi1>
    %12 = arith.xori %8, %11 : vector<1x256xi1>
    %13 = arith.andi %12, %6 : vector<1x256xi1>
    %14 = vector.broadcast %2 : i32 to vector<1x256xi32>
    %15 = arith.addi %4, %14 : vector<1x256xi32>
    %16 = arith.select %13, %15, %4 : vector<1x256xi1>, vector<1x256xi32>
    %c-1_i32 = arith.constant -1 : i32
    %17 = vector.broadcast %c-1_i32 : i32 to vector<1x256xi32>
    %18 = arith.addi %16, %17 : vector<1x256xi32>
    %c0_i32_3 = arith.constant 0 : i32
    %19 = vector.broadcast %c0_i32_3 : i32 to vector<1x256xi32>
    %20 = arith.cmpi sge, %18, %19 : vector<1x256xi32>
    %c-1_i32_4 = arith.constant -1 : i32
    %21 = vector.broadcast %c-1_i32_4 : i32 to vector<1x256xi32>
    %22 = arith.addi %16, %21 : vector<1x256xi32>
    %c16_i32_5 = arith.constant 16 : i32
    %23 = vector.broadcast %c16_i32_5 : i32 to vector<1x256xi32>
    %24 = arith.cmpi slt, %22, %23 : vector<1x256xi32>
    %25 = arith.andi %20, %24 : vector<1x256xi1>
    %c1_i32_6 = arith.constant 1 : i32
    %26 = vector.broadcast %c1_i32_6 : i32 to vector<1x256xi32>
    %27 = arith.addi %16, %26 : vector<1x256xi32>
    %c0_i32_7 = arith.constant 0 : i32
    %28 = vector.broadcast %c0_i32_7 : i32 to vector<1x256xi32>
    %29 = arith.cmpi sge, %27, %28 : vector<1x256xi32>
    %c1_i32_8 = arith.constant 1 : i32
    %30 = vector.broadcast %c1_i32_8 : i32 to vector<1x256xi32>
    %31 = arith.addi %16, %30 : vector<1x256xi32>
    %c16_i32_9 = arith.constant 16 : i32
    %32 = vector.broadcast %c16_i32_9 : i32 to vector<1x256xi32>
    %33 = arith.cmpi slt, %31, %32 : vector<1x256xi32>
    %34 = arith.andi %29, %33 : vector<1x256xi1>
    %cst = arith.constant 0.000000e+00 : bf16
    %35 = vector.broadcast %cst : bf16 to vector<16x17xbf16>
    %c0 = arith.constant 0 : index
    %c0_10 = arith.constant 0 : index
    %36 = vector.load %arg7[%c0, %c0_10] : memref<16x290xbf16, #tpu.memory_space<vmem>>, vector<16x17xbf16>
    tpu.vector_store %arg7[%c0, %c0_10], %35 {strides = array<i32>} : memref<16x290xbf16, #tpu.memory_space<vmem>>, vector<16x17xbf16>,
    %cst_11 = arith.constant 0.000000e+00 : bf16
    %37 = vector.broadcast %cst_11 : bf16 to vector<16x17xbf16>
    %c0_12 = arith.constant 0 : index
    %c273 = arith.constant 273 : index
    %38 = vector.load %arg7[%c0_12, %c273] : memref<16x290xbf16, #tpu.memory_space<vmem>>, vector<16x17xbf16>
    tpu.vector_store %arg7[%c0_12, %c273], %37 {strides = array<i32>} : memref<16x290xbf16, #tpu.memory_space<vmem>>, vector<16x17xbf16>,
    %c0_13 = arith.constant 0 : index
    %c0_14 = arith.constant 0 : index
    %c0_15 = arith.constant 0 : index
    %39 = vector.load %arg1[%c0_13, %c0_14, %c0_15] : memref<2x16x256xf32, #tpu.memory_space<vmem>>, vector<1x16x256xf32>
    %40 = vector.shape_cast %39 : vector<1x16x256xf32> to vector<16x256xf32>
    %41 = arith.truncf %40 : vector<16x256xf32> to vector<16x256xbf16>
    %c0_16 = arith.constant 0 : index
    %c17 = arith.constant 17 : index
    %42 = vector.load %arg7[%c0_16, %c17] : memref<16x290xbf16, #tpu.memory_space<vmem>>, vector<16x256xbf16>
    tpu.vector_store %arg7[%c0_16, %c17], %41 {strides = array<i32>} : memref<16x290xbf16, #tpu.memory_space<vmem>>, vector<16x256xbf16>,
    %c0_17 = arith.constant 0 : index
    %c0_18 = arith.constant 0 : index
    %43 = vector.load %arg7[%c0_17, %c0_18] : memref<16x290xbf16, #tpu.memory_space<vmem>>, vector<16x256xbf16>
    %cst_19 = arith.constant 0.000000e+00 : bf16
    %44 = vector.shape_cast %25 : vector<1x256xi1> to vector<1x256xi1>
    %45 = vector.broadcast %44 : vector<1x256xi1> to vector<16x256xi1>
    %46 = vector.broadcast %cst_19 : bf16 to vector<16x256xbf16>
    %47 = arith.select %45, %43, %46 : vector<16x256xi1>, vector<16x256xbf16>
    %c0_20 = arith.constant 0 : index
    %c0_21 = arith.constant 0 : index
    %48 = vector.load %arg8[%c0_20, %c0_21] : memref<144x512xbf16, #tpu.memory_space<vmem>>, vector<16x256xbf16>
    tpu.vector_store %arg8[%c0_20, %c0_21], %47 {strides = array<i32>} : memref<144x512xbf16, #tpu.memory_space<vmem>>, vector<16x256xbf16>,
    %c0_22 = arith.constant 0 : index
    %c1 = arith.constant 1 : index
    %49 = vector.load %arg7[%c0_22, %c1] : memref<16x290xbf16, #tpu.memory_space<vmem>>, vector<16x256xbf16>
    %c16 = arith.constant 16 : index
    %c0_23 = arith.constant 0 : index
    %50 = vector.load %arg8[%c16, %c0_23] : memref<144x512xbf16, #tpu.memory_space<vmem>>, vector<16x256xbf16>
    tpu.vector_store %arg8[%c16, %c0_23], %49 {strides = array<i32>} : memref<144x512xbf16, #tpu.memory_space<vmem>>, vector<16x256xbf16>,
    %c0_24 = arith.constant 0 : index
    %c2 = arith.constant 2 : index
    %51 = vector.load %arg7[%c0_24, %c2] : memref<16x290xbf16, #tpu.memory_space<vmem>>, vector<16x256xbf16>
    %cst_25 = arith.constant 0.000000e+00 : bf16
    %52 = vector.shape_cast %34 : vector<1x256xi1> to vector<1x256xi1>
    %53 = vector.broadcast %52 : vector<1x256xi1> to vector<16x256xi1>
    %54 = vector.broadcast %cst_25 : bf16 to vector<16x256xbf16>
    %55 = arith.select %53, %51, %54 : vector<16x256xi1>, vector<16x256xbf16>
    %c32 = arith.constant 32 : index
    %c0_26 = arith.constant 0 : index
    %56 = vector.load %arg8[%c32, %c0_26] : memref<144x512xbf16, #tpu.memory_space<vmem>>, vector<16x256xbf16>
    tpu.vector_store %arg8[%c32, %c0_26], %55 {strides = array<i32>} : memref<144x512xbf16, #tpu.memory_space<vmem>>, vector<16x256xbf16>,
    %c0_27 = arith.constant 0 : index
    %c16_28 = arith.constant 16 : index
    %57 = vector.load %arg7[%c0_27, %c16_28] : memref<16x290xbf16, #tpu.memory_space<vmem>>, vector<16x256xbf16>
    %cst_29 = arith.constant 0.000000e+00 : bf16
    %58 = vector.shape_cast %25 : vector<1x256xi1> to vector<1x256xi1>
    %59 = vector.broadcast %58 : vector<1x256xi1> to vector<16x256xi1>
    %60 = vector.broadcast %cst_29 : bf16 to vector<16x256xbf16>
    %61 = arith.select %59, %57, %60 : vector<16x256xi1>, vector<16x256xbf16>
    %c48 = arith.constant 48 : index
    %c0_30 = arith.constant 0 : index
    %62 = vector.load %arg8[%c48, %c0_30] : memref<144x512xbf16, #tpu.memory_space<vmem>>, vector<16x256xbf16>
    tpu.vector_store %arg8[%c48, %c0_30], %61 {strides = array<i32>} : memref<144x512xbf16, #tpu.memory_space<vmem>>, vector<16x256xbf16>,
    %c0_31 = arith.constant 0 : index
    %c17_32 = arith.constant 17 : index
    %63 = vector.load %arg7[%c0_31, %c17_32] : memref<16x290xbf16, #tpu.memory_space<vmem>>, vector<16x256xbf16>
    %c64 = arith.constant 64 : index
    %c0_33 = arith.constant 0 : index
    %64 = vector.load %arg8[%c64, %c0_33] : memref<144x512xbf16, #tpu.memory_space<vmem>>, vector<16x256xbf16>
    tpu.vector_store %arg8[%c64, %c0_33], %63 {strides = array<i32>} : memref<144x512xbf16, #tpu.memory_space<vmem>>, vector<16x256xbf16>,
    %c0_34 = arith.constant 0 : index
    %c18 = arith.constant 18 : index
    %65 = vector.load %arg7[%c0_34, %c18] : memref<16x290xbf16, #tpu.memory_space<vmem>>, vector<16x256xbf16>
    %cst_35 = arith.constant 0.000000e+00 : bf16
    %66 = vector.shape_cast %34 : vector<1x256xi1> to vector<1x256xi1>
    %67 = vector.broadcast %66 : vector<1x256xi1> to vector<16x256xi1>
    %68 = vector.broadcast %cst_35 : bf16 to vector<16x256xbf16>
    %69 = arith.select %67, %65, %68 : vector<16x256xi1>, vector<16x256xbf16>
    %c80 = arith.constant 80 : index
    %c0_36 = arith.constant 0 : index
    %70 = vector.load %arg8[%c80, %c0_36] : memref<144x512xbf16, #tpu.memory_space<vmem>>, vector<16x256xbf16>
    tpu.vector_store %arg8[%c80, %c0_36], %69 {strides = array<i32>} : memref<144x512xbf16, #tpu.memory_space<vmem>>, vector<16x256xbf16>,
    %c0_37 = arith.constant 0 : index
    %c32_38 = arith.constant 32 : index
    %71 = vector.load %arg7[%c0_37, %c32_38] : memref<16x290xbf16, #tpu.memory_space<vmem>>, vector<16x256xbf16>
    %cst_39 = arith.constant 0.000000e+00 : bf16
    %72 = vector.shape_cast %25 : vector<1x256xi1> to vector<1x256xi1>
    %73 = vector.broadcast %72 : vector<1x256xi1> to vector<16x256xi1>
    %74 = vector.broadcast %cst_39 : bf16 to vector<16x256xbf16>
    %75 = arith.select %73, %71, %74 : vector<16x256xi1>, vector<16x256xbf16>
    %c96 = arith.constant 96 : index
    %c0_40 = arith.constant 0 : index
    %76 = vector.load %arg8[%c96, %c0_40] : memref<144x512xbf16, #tpu.memory_space<vmem>>, vector<16x256xbf16>
    tpu.vector_store %arg8[%c96, %c0_40], %75 {strides = array<i32>} : memref<144x512xbf16, #tpu.memory_space<vmem>>, vector<16x256xbf16>,
    %c0_41 = arith.constant 0 : index
    %c33 = arith.constant 33 : index
    %77 = vector.load %arg7[%c0_41, %c33] : memref<16x290xbf16, #tpu.memory_space<vmem>>, vector<16x256xbf16>
    %c112 = arith.constant 112 : index
    %c0_42 = arith.constant 0 : index
    %78 = vector.load %arg8[%c112, %c0_42] : memref<144x512xbf16, #tpu.memory_space<vmem>>, vector<16x256xbf16>
    tpu.vector_store %arg8[%c112, %c0_42], %77 {strides = array<i32>} : memref<144x512xbf16, #tpu.memory_space<vmem>>, vector<16x256xbf16>,
    %c0_43 = arith.constant 0 : index
    %c34 = arith.constant 34 : index
    %79 = vector.load %arg7[%c0_43, %c34] : memref<16x290xbf16, #tpu.memory_space<vmem>>, vector<16x256xbf16>
    %cst_44 = arith.constant 0.000000e+00 : bf16
    %80 = vector.shape_cast %34 : vector<1x256xi1> to vector<1x256xi1>
    %81 = vector.broadcast %80 : vector<1x256xi1> to vector<16x256xi1>
    %82 = vector.broadcast %cst_44 : bf16 to vector<16x256xbf16>
    %83 = arith.select %81, %79, %82 : vector<16x256xi1>, vector<16x256xbf16>
    %c128 = arith.constant 128 : index
    %c0_45 = arith.constant 0 : index
    %84 = vector.load %arg8[%c128, %c0_45] : memref<144x512xbf16, #tpu.memory_space<vmem>>, vector<16x256xbf16>
    tpu.vector_store %arg8[%c128, %c0_45], %83 {strides = array<i32>} : memref<144x512xbf16, #tpu.memory_space<vmem>>, vector<16x256xbf16>,
    %c1_46 = arith.constant 1 : index
    %c0_47 = arith.constant 0 : index
    %c0_48 = arith.constant 0 : index
    %85 = vector.load %arg1[%c1_46, %c0_47, %c0_48] : memref<2x16x256xf32, #tpu.memory_space<vmem>>, vector<1x16x256xf32>
    %86 = vector.shape_cast %85 : vector<1x16x256xf32> to vector<16x256xf32>
    %87 = arith.truncf %86 : vector<16x256xf32> to vector<16x256xbf16>
    %c0_49 = arith.constant 0 : index
    %c17_50 = arith.constant 17 : index
    %88 = vector.load %arg7[%c0_49, %c17_50] : memref<16x290xbf16, #tpu.memory_space<vmem>>, vector<16x256xbf16>
    tpu.vector_store %arg7[%c0_49, %c17_50], %87 {strides = array<i32>} : memref<16x290xbf16, #tpu.memory_space<vmem>>, vector<16x256xbf16>,
    %c0_51 = arith.constant 0 : index
    %c0_52 = arith.constant 0 : index
    %89 = vector.load %arg7[%c0_51, %c0_52] : memref<16x290xbf16, #tpu.memory_space<vmem>>, vector<16x256xbf16>
    %cst_53 = arith.constant 0.000000e+00 : bf16
    %90 = vector.shape_cast %25 : vector<1x256xi1> to vector<1x256xi1>
    %91 = vector.broadcast %90 : vector<1x256xi1> to vector<16x256xi1>
    %92 = vector.broadcast %cst_53 : bf16 to vector<16x256xbf16>
    %93 = arith.select %91, %89, %92 : vector<16x256xi1>, vector<16x256xbf16>
    %c0_54 = arith.constant 0 : index
    %c256 = arith.constant 256 : index
    %94 = vector.load %arg8[%c0_54, %c256] : memref<144x512xbf16, #tpu.memory_space<vmem>>, vector<16x256xbf16>
    tpu.vector_store %arg8[%c0_54, %c256], %93 {strides = array<i32>} : memref<144x512xbf16, #tpu.memory_space<vmem>>, vector<16x256xbf16>,
    %c0_55 = arith.constant 0 : index
    %c1_56 = arith.constant 1 : index
    %95 = vector.load %arg7[%c0_55, %c1_56] : memref<16x290xbf16, #tpu.memory_space<vmem>>, vector<16x256xbf16>
    %c16_57 = arith.constant 16 : index
    %c256_58 = arith.constant 256 : index
    %96 = vector.load %arg8[%c16_57, %c256_58] : memref<144x512xbf16, #tpu.memory_space<vmem>>, vector<16x256xbf16>
    tpu.vector_store %arg8[%c16_57, %c256_58], %95 {strides = array<i32>} : memref<144x512xbf16, #tpu.memory_space<vmem>>, vector<16x256xbf16>,
    %c0_59 = arith.constant 0 : index
    %c2_60 = arith.constant 2 : index
    %97 = vector.load %arg7[%c0_59, %c2_60] : memref<16x290xbf16, #tpu.memory_space<vmem>>, vector<16x256xbf16>
    %cst_61 = arith.constant 0.000000e+00 : bf16
    %98 = vector.shape_cast %34 : vector<1x256xi1> to vector<1x256xi1>
    %99 = vector.broadcast %98 : vector<1x256xi1> to vector<16x256xi1>
    %100 = vector.broadcast %cst_61 : bf16 to vector<16x256xbf16>
    %101 = arith.select %99, %97, %100 : vector<16x256xi1>, vector<16x256xbf16>
    %c32_62 = arith.constant 32 : index
    %c256_63 = arith.constant 256 : index
    %102 = vector.load %arg8[%c32_62, %c256_63] : memref<144x512xbf16, #tpu.memory_space<vmem>>, vector<16x256xbf16>
    tpu.vector_store %arg8[%c32_62, %c256_63], %101 {strides = array<i32>} : memref<144x512xbf16, #tpu.memory_space<vmem>>, vector<16x256xbf16>,
    %c0_64 = arith.constant 0 : index
    %c16_65 = arith.constant 16 : index
    %103 = vector.load %arg7[%c0_64, %c16_65] : memref<16x290xbf16, #tpu.memory_space<vmem>>, vector<16x256xbf16>
    %cst_66 = arith.constant 0.000000e+00 : bf16
    %104 = vector.shape_cast %25 : vector<1x256xi1> to vector<1x256xi1>
    %105 = vector.broadcast %104 : vector<1x256xi1> to vector<16x256xi1>
    %106 = vector.broadcast %cst_66 : bf16 to vector<16x256xbf16>
    %107 = arith.select %105, %103, %106 : vector<16x256xi1>, vector<16x256xbf16>
    %c48_67 = arith.constant 48 : index
    %c256_68 = arith.constant 256 : index
    %108 = vector.load %arg8[%c48_67, %c256_68] : memref<144x512xbf16, #tpu.memory_space<vmem>>, vector<16x256xbf16>
    tpu.vector_store %arg8[%c48_67, %c256_68], %107 {strides = array<i32>} : memref<144x512xbf16, #tpu.memory_space<vmem>>, vector<16x256xbf16>,
    %c0_69 = arith.constant 0 : index
    %c17_70 = arith.constant 17 : index
    %109 = vector.load %arg7[%c0_69, %c17_70] : memref<16x290xbf16, #tpu.memory_space<vmem>>, vector<16x256xbf16>
    %c64_71 = arith.constant 64 : index
    %c256_72 = arith.constant 256 : index
    %110 = vector.load %arg8[%c64_71, %c256_72] : memref<144x512xbf16, #tpu.memory_space<vmem>>, vector<16x256xbf16>
    tpu.vector_store %arg8[%c64_71, %c256_72], %109 {strides = array<i32>} : memref<144x512xbf16, #tpu.memory_space<vmem>>, vector<16x256xbf16>,
    %c0_73 = arith.constant 0 : index
    %c18_74 = arith.constant 18 : index
    %111 = vector.load %arg7[%c0_73, %c18_74] : memref<16x290xbf16, #tpu.memory_space<vmem>>, vector<16x256xbf16>
    %cst_75 = arith.constant 0.000000e+00 : bf16
    %112 = vector.shape_cast %34 : vector<1x256xi1> to vector<1x256xi1>
    %113 = vector.broadcast %112 : vector<1x256xi1> to vector<16x256xi1>
    %114 = vector.broadcast %cst_75 : bf16 to vector<16x256xbf16>
    %115 = arith.select %113, %111, %114 : vector<16x256xi1>, vector<16x256xbf16>
    %c80_76 = arith.constant 80 : index
    %c256_77 = arith.constant 256 : index
    %116 = vector.load %arg8[%c80_76, %c256_77] : memref<144x512xbf16, #tpu.memory_space<vmem>>, vector<16x256xbf16>
    tpu.vector_store %arg8[%c80_76, %c256_77], %115 {strides = array<i32>} : memref<144x512xbf16, #tpu.memory_space<vmem>>, vector<16x256xbf16>,
    %c0_78 = arith.constant 0 : index
    %c32_79 = arith.constant 32 : index
    %117 = vector.load %arg7[%c0_78, %c32_79] : memref<16x290xbf16, #tpu.memory_space<vmem>>, vector<16x256xbf16>
    %cst_80 = arith.constant 0.000000e+00 : bf16
    %118 = vector.shape_cast %25 : vector<1x256xi1> to vector<1x256xi1>
    %119 = vector.broadcast %118 : vector<1x256xi1> to vector<16x256xi1>
    %120 = vector.broadcast %cst_80 : bf16 to vector<16x256xbf16>
    %121 = arith.select %119, %117, %120 : vector<16x256xi1>, vector<16x256xbf16>
    %c96_81 = arith.constant 96 : index
    %c256_82 = arith.constant 256 : index
    %122 = vector.load %arg8[%c96_81, %c256_82] : memref<144x512xbf16, #tpu.memory_space<vmem>>, vector<16x256xbf16>
    tpu.vector_store %arg8[%c96_81, %c256_82], %121 {strides = array<i32>} : memref<144x512xbf16, #tpu.memory_space<vmem>>, vector<16x256xbf16>,
    %c0_83 = arith.constant 0 : index
    %c33_84 = arith.constant 33 : index
    %123 = vector.load %arg7[%c0_83, %c33_84] : memref<16x290xbf16, #tpu.memory_space<vmem>>, vector<16x256xbf16>
    %c112_85 = arith.constant 112 : index
    %c256_86 = arith.constant 256 : index
    %124 = vector.load %arg8[%c112_85, %c256_86] : memref<144x512xbf16, #tpu.memory_space<vmem>>, vector<16x256xbf16>
    tpu.vector_store %arg8[%c112_85, %c256_86], %123 {strides = array<i32>} : memref<144x512xbf16, #tpu.memory_space<vmem>>, vector<16x256xbf16>,
    %c0_87 = arith.constant 0 : index
    %c34_88 = arith.constant 34 : index
    %125 = vector.load %arg7[%c0_87, %c34_88] : memref<16x290xbf16, #tpu.memory_space<vmem>>, vector<16x256xbf16>
    %cst_89 = arith.constant 0.000000e+00 : bf16
    %126 = vector.shape_cast %34 : vector<1x256xi1> to vector<1x256xi1>
    %127 = vector.broadcast %126 : vector<1x256xi1> to vector<16x256xi1>
    %128 = vector.broadcast %cst_89 : bf16 to vector<16x256xbf16>
    %129 = arith.select %127, %125, %128 : vector<16x256xi1>, vector<16x256xbf16>
    %c128_90 = arith.constant 128 : index
    %c256_91 = arith.constant 256 : index
    %130 = vector.load %arg8[%c128_90, %c256_91] : memref<144x512xbf16, #tpu.memory_space<vmem>>, vector<16x256xbf16>
    tpu.vector_store %arg8[%c128_90, %c256_91], %129 {strides = array<i32>} : memref<144x512xbf16, #tpu.memory_space<vmem>>, vector<16x256xbf16>,
    %c0_92 = arith.constant 0 : index
    %c0_93 = arith.constant 0 : index
    %131 = vector.load %arg2[%c0_92, %c0_93] : memref<24x144xbf16, #tpu.memory_space<vmem>>, vector<24x144xbf16>
    %c0_94 = arith.constant 0 : index
    %c0_95 = arith.constant 0 : index
    %132 = vector.load %arg8[%c0_94, %c0_95] : memref<144x512xbf16, #tpu.memory_space<vmem>>, vector<144x512xbf16>
    %cst_96 = arith.constant dense<0.000000e+00> : vector<24x512xf32>
    %133 = tpu.matmul %131, %132, %cst_96 {dimension_numbers = #tpu.dot_dimension_numbers<[1], [0], [0], [1], [0, 0, 1, 1], [], []>} : vector<24x144xbf16>, vector<144x512xbf16>, vector<24x512xf32> -> vector<24x512xf32>
    %c0_97 = arith.constant 0 : index
    %c0_98 = arith.constant 0 : index
    %134 = vector.load %arg3[%c0_97, %c0_98] : memref<24x8xf32, #tpu.memory_space<vmem>>, vector<24x8xf32>
    %135 = vector.extract_strided_slice %134 {offsets = [0, 0], sizes = [24, 1], strides = [1, 1]} : vector<24x8xf32> to vector<24x1xf32>
    %136 = vector.extract_strided_slice %134 {offsets = [0, 1], sizes = [24, 1], strides = [1, 1]} : vector<24x8xf32> to vector<24x1xf32>
    %137 = vector.extract_strided_slice %134 {offsets = [0, 2], sizes = [24, 1], strides = [1, 1]} : vector<24x8xf32> to vector<24x1xf32>
    %138 = vector.extract_strided_slice %134 {offsets = [0, 3], sizes = [24, 1], strides = [1, 1]} : vector<24x8xf32> to vector<24x1xf32>
    %139 = vector.extract_strided_slice %134 {offsets = [0, 4], sizes = [24, 1], strides = [1, 1]} : vector<24x8xf32> to vector<24x1xf32>
    %140 = vector.extract_strided_slice %134 {offsets = [0, 5], sizes = [3, 1], strides = [1, 1]} : vector<24x8xf32> to vector<3x1xf32>
    %141 = vector.broadcast %135 : vector<24x1xf32> to vector<24x512xf32>
    %142 = arith.mulf %133, %141 : vector<24x512xf32>
    %143 = vector.broadcast %136 : vector<24x1xf32> to vector<24x512xf32>
    %144 = arith.addf %142, %143 : vector<24x512xf32>
    %cst_99 = arith.constant 0.000000e+00 : f32
    %145 = vector.broadcast %cst_99 : f32 to vector<24x512xf32>
    %146 = arith.cmpf ogt, %144, %145 : vector<24x512xf32>
    %cst_100 = arith.constant 0.00999999977 : f32
    %147 = vector.broadcast %cst_100 : f32 to vector<24x512xf32>
    %148 = arith.mulf %147, %144 : vector<24x512xf32>
    %149 = arith.select %146, %144, %148 : vector<24x512xi1>, vector<24x512xf32>
    %150 = vector.extract_strided_slice %149 {offsets = [0, 0], sizes = [24, 256], strides = [1, 1]} : vector<24x512xf32> to vector<24x256xf32>
    %cst_101 = arith.constant dense<0.000000e+00> : vector<24xf32>
    %151 = vector.multi_reduction <add>, %150, %cst_101 [1] : vector<24x256xf32> to vector<24xf32>
    %152 = vector.shape_cast %151 : vector<24xf32> to vector<24x1xf32>
    %cst_102 = arith.constant 2.560000e+02 : f32
    %153 = vector.broadcast %cst_102 : f32 to vector<24x1xf32>
    %154 = arith.divf %152, %153 : vector<24x1xf32>
    %155 = vector.extract_strided_slice %149 {offsets = [0, 256], sizes = [24, 256], strides = [1, 1]} : vector<24x512xf32> to vector<24x256xf32>
    %cst_103 = arith.constant dense<0.000000e+00> : vector<24xf32>
    %156 = vector.multi_reduction <add>, %155, %cst_103 [1] : vector<24x256xf32> to vector<24xf32>
    %157 = vector.shape_cast %156 : vector<24xf32> to vector<24x1xf32>
    %cst_104 = arith.constant 2.560000e+02 : f32
    %158 = vector.broadcast %cst_104 : f32 to vector<24x1xf32>
    %159 = arith.divf %157, %158 : vector<24x1xf32>
    %160 = tpu.concatenate %154, %159 in 1 : vector<24x1xf32>, vector<24x1xf32> -> vector<24x2xf32>
    %c0_105 = arith.constant 0 : index
    %c0_106 = arith.constant 0 : index
    %161 = vector.load %arg4[%c0_105, %c0_106] : memref<3x24xf32, #tpu.memory_space<vmem>>, vector<3x24xf32>
    %cst_107 = arith.constant dense<0.000000e+00> : vector<3x2xf32>
    %162 = tpu.matmul %161, %160, %cst_107 {dimension_numbers = #tpu.dot_dimension_numbers<[1], [0], [0], [1], [0, 0, 1, 1], [], []>} : vector<3x24xf32>, vector<24x2xf32>, vector<3x2xf32> -> vector<3x2xf32>
    %163 = vector.broadcast %140 : vector<3x1xf32> to vector<3x2xf32>
    %164 = arith.addf %162, %163 : vector<3x2xf32>
    %cst_108 = arith.constant 0.000000e+00 : f32
    %165 = vector.broadcast %cst_108 : f32 to vector<3x2xf32>
    %166 = arith.cmpf ogt, %164, %165 : vector<3x2xf32>
    %cst_109 = arith.constant 0.00999999977 : f32
    %167 = vector.broadcast %cst_109 : f32 to vector<3x2xf32>
    %168 = arith.mulf %167, %164 : vector<3x2xf32>
    %169 = arith.select %166, %164, %168 : vector<3x2xi1>, vector<3x2xf32>
    %c0_110 = arith.constant 0 : index
    %c0_111 = arith.constant 0 : index
    %170 = vector.load %arg5[%c0_110, %c0_111] : memref<24x3xf32, #tpu.memory_space<vmem>>, vector<24x3xf32>
    %cst_112 = arith.constant dense<0.000000e+00> : vector<24x2xf32>
    %171 = tpu.matmul %170, %169, %cst_112 {dimension_numbers = #tpu.dot_dimension_numbers<[1], [0], [0], [1], [0, 0, 1, 1], [], []>} : vector<24x3xf32>, vector<3x2xf32>, vector<24x2xf32> -> vector<24x2xf32>
    %172 = vector.broadcast %139 : vector<24x1xf32> to vector<24x2xf32>
    %173 = arith.addf %171, %172 : vector<24x2xf32>
    %174 = arith.negf %173 : vector<24x2xf32>
    %175 = math.exp %174 : vector<24x2xf32>
    %cst_113 = arith.constant 1.000000e+00 : f32
    %176 = vector.broadcast %cst_113 : f32 to vector<24x2xf32>
    %177 = arith.addf %176, %175 : vector<24x2xf32>
    %178 = arith.divf %176, %177 : vector<24x2xf32>
    %179 = vector.extract_strided_slice %149 {offsets = [0, 0], sizes = [24, 256], strides = [1, 1]} : vector<24x512xf32> to vector<24x256xf32>
    %180 = vector.extract_strided_slice %178 {offsets = [0, 0], sizes = [24, 1], strides = [1, 1]} : vector<24x2xf32> to vector<24x1xf32>
    %181 = vector.broadcast %180 : vector<24x1xf32> to vector<24x256xf32>
    %182 = arith.mulf %179, %181 : vector<24x256xf32>
    %183 = vector.broadcast %137 : vector<24x1xf32> to vector<24x256xf32>
    %184 = arith.mulf %182, %183 : vector<24x256xf32>
    %185 = vector.broadcast %138 : vector<24x1xf32> to vector<24x256xf32>
    %186 = arith.addf %184, %185 : vector<24x256xf32>
    %cst_114 = arith.constant 0.000000e+00 : f32
    %187 = vector.broadcast %cst_114 : f32 to vector<24x256xf32>
    %188 = arith.cmpf ogt, %186, %187 : vector<24x256xf32>
    %cst_115 = arith.constant 0.00999999977 : f32
    %189 = vector.broadcast %cst_115 : f32 to vector<24x256xf32>
    %190 = arith.mulf %189, %186 : vector<24x256xf32>
    %191 = arith.select %188, %186, %190 : vector<24x256xi1>, vector<24x256xf32>
    %192 = arith.truncf %191 : vector<24x256xf32> to vector<24x256xbf16>
    %c0_116 = arith.constant 0 : index
    %c0_117 = arith.constant 0 : index
    %c0_118 = arith.constant 0 : index
    %193 = vector.load %arg6[%c0_116, %c0_117, %c0_118] : memref<2x24x256xbf16, #tpu.memory_space<vmem>>, vector<1x24x256xbf16>
    %194 = vector.shape_cast %193 : vector<1x24x256xbf16> to vector<24x256xbf16>
    %195 = vector.shape_cast %192 : vector<24x256xbf16> to vector<1x24x256xbf16>
    tpu.vector_store %arg6[%c0_116, %c0_117, %c0_118], %195 {strides = array<i32>} : memref<2x24x256xbf16, #tpu.memory_space<vmem>>, vector<1x24x256xbf16>,
    %196 = vector.extract_strided_slice %149 {offsets = [0, 256], sizes = [24, 256], strides = [1, 1]} : vector<24x512xf32> to vector<24x256xf32>
    %197 = vector.extract_strided_slice %178 {offsets = [0, 1], sizes = [24, 1], strides = [1, 1]} : vector<24x2xf32> to vector<24x1xf32>
    %198 = vector.broadcast %197 : vector<24x1xf32> to vector<24x256xf32>
    %199 = arith.mulf %196, %198 : vector<24x256xf32>
    %200 = vector.broadcast %137 : vector<24x1xf32> to vector<24x256xf32>
    %201 = arith.mulf %199, %200 : vector<24x256xf32>
    %202 = vector.broadcast %138 : vector<24x1xf32> to vector<24x256xf32>
    %203 = arith.addf %201, %202 : vector<24x256xf32>
    %cst_119 = arith.constant 0.000000e+00 : f32
    %204 = vector.broadcast %cst_119 : f32 to vector<24x256xf32>
    %205 = arith.cmpf ogt, %203, %204 : vector<24x256xf32>
    %cst_120 = arith.constant 0.00999999977 : f32
    %206 = vector.broadcast %cst_120 : f32 to vector<24x256xf32>
    %207 = arith.mulf %206, %203 : vector<24x256xf32>
    %208 = arith.select %205, %203, %207 : vector<24x256xi1>, vector<24x256xf32>
    %209 = arith.truncf %208 : vector<24x256xf32> to vector<24x256xbf16>
    %c1_121 = arith.constant 1 : index
    %c0_122 = arith.constant 0 : index
    %c0_123 = arith.constant 0 : index
    %210 = vector.load %arg6[%c1_121, %c0_122, %c0_123] : memref<2x24x256xbf16, #tpu.memory_space<vmem>>, vector<1x24x256xbf16>
    %211 = vector.shape_cast %210 : vector<1x24x256xbf16> to vector<24x256xbf16>
    %212 = vector.shape_cast %209 : vector<24x256xbf16> to vector<1x24x256xbf16>
    tpu.vector_store %arg6[%c1_121, %c0_122, %c0_123], %212 {strides = array<i32>} : memref<2x24x256xbf16, #tpu.memory_space<vmem>>, vector<1x24x256xbf16>,
    return
  }
  func.func @transform_0(%arg0: i32) -> (i32, i32, i32) {
    %c0_i32 = arith.constant 0 : i32
    %c0_i32_0 = arith.constant 0 : i32
    %c0_i32_1 = arith.constant 0 : i32
    return %arg0, %c0_i32, %c0_i32_0 : i32, i32, i32
  }
  func.func @transform_1(%arg0: i32) -> (i32, i32) {
    %c0_i32 = arith.constant 0 : i32
    %c0_i32_0 = arith.constant 0 : i32
    %c0_i32_1 = arith.constant 0 : i32
    return %c0_i32, %c0_i32_0 : i32, i32
  }
  func.func @transform_2(%arg0: i32) -> (i32, i32) {
    %c0_i32 = arith.constant 0 : i32
    %c0_i32_0 = arith.constant 0 : i32
    %c0_i32_1 = arith.constant 0 : i32
    return %c0_i32, %c0_i32_0 : i32, i32
  }
  func.func @transform_3(%arg0: i32) -> (i32, i32) {
    %c0_i32 = arith.constant 0 : i32
    %c0_i32_0 = arith.constant 0 : i32
    %c0_i32_1 = arith.constant 0 : i32
    return %c0_i32, %c0_i32_0 : i32, i32
  }
  func.func @transform_4(%arg0: i32) -> (i32, i32) {
    %c0_i32 = arith.constant 0 : i32
    %c0_i32_0 = arith.constant 0 : i32
    %c0_i32_1 = arith.constant 0 : i32
    return %c0_i32, %c0_i32_0 : i32, i32
  }
  func.func @transform_5(%arg0: i32) -> (i32, i32, i32) {
    %c0_i32 = arith.constant 0 : i32
    %c0_i32_0 = arith.constant 0 : i32
    %c0_i32_1 = arith.constant 0 : i32
    return %arg0, %c0_i32, %c0_i32_0 : i32, i32, i32
  }
}

</mosaic_0001>

<llo_original>
// kernel: conv2d_batchnorm_forward.1
$region0: #{conv2d_batchnorm_forward.1}
  #allocation0 [shape = 'u32[]', space=smem, size = 0x4, offset = 0x4, fixed_abs, tag = 'smem constant byte address 0x4 - core index']
  #allocation1 [shape = 'u32[144,128]{1,0:T(1,128)}', space=vmem, size = 0x12000, scoped, tag = 'internal scratch']
  #allocation2 [shape = 'bf16[16,290]{1,0:T(8,128)(2,1)}', space=vmem, size = 0x3000, scoped, tag = 'scratch operand']
  #allocation3 [shape = 'bf16[144,512]{1,0:T(8,128)(2,1)}', space=vmem, size = 0x24000, scoped, tag = 'scratch operand']
  %s0 = inlined_call_operand.vmem [shape: f32[2,16,256], index: 0, kind: input, shape index: {}]
  %s1 = inlined_call_operand.vmem [shape: bf16[24,144], index: 1, kind: input, shape index: {}]
  %s2 = inlined_call_operand.vmem [shape: f32[24,8], index: 2, kind: input, shape index: {}]
  %s3 = inlined_call_operand.vmem [shape: f32[3,24], index: 3, kind: input, shape index: {}]
  %s4 = inlined_call_operand.vmem [shape: f32[24,3], index: 4, kind: input, shape index: {}]
  %s5 = inlined_call_operand.vmem [shape: bf16[2,24,256], index: 5, kind: output, shape index: {}]
  %s6 = sld [smem:[#allocation0]]
  $region30: #{conv2d_batchnorm_forward.1} parent=0
    _
  %s8 = ssub.s32 1, %s6
  %s9 = scalar_select 0, %s8, %s6
  // Predicated region
  $region2: #{conv2d_batchnorm_forward.1} parent=0 // pred_check
    _
  $region3: #{conv2d_batchnorm_forward.1} parent=0 // pred_check_branch
    %11 = sbr.rel (0) target = $region5
  $region4: #{conv2d_batchnorm_forward.1} parent=0 // pred_region
    _
  $region5: #{conv2d_batchnorm_forward.1} parent=0 // pred_fallthru
    _
  // Predicated region
  $region6: #{conv2d_batchnorm_forward.1} parent=0 // pred_check
    _
  $region7: #{conv2d_batchnorm_forward.1} parent=0 // pred_check_branch
    %13 = sbr.rel (0) target = $region9
  $region8: #{conv2d_batchnorm_forward.1} parent=0 // pred_region
    _
  $region9: #{conv2d_batchnorm_forward.1} parent=0 // pred_fallthru
    _
  // Predicated region
  $region10: #{conv2d_batchnorm_forward.1} parent=0 // pred_check
    _
  $region11: #{conv2d_batchnorm_forward.1} parent=0 // pred_check_branch
    %15 = sbr.rel (0) target = $region13
  $region12: #{conv2d_batchnorm_forward.1} parent=0 // pred_region
    _
  $region13: #{conv2d_batchnorm_forward.1} parent=0 // pred_fallthru
    _
  // Predicated region
  $region14: #{conv2d_batchnorm_forward.1} parent=0 // pred_check
    _
  $region15: #{conv2d_batchnorm_forward.1} parent=0 // pred_check_branch
    %17 = sbr.rel (0) target = $region17
  $region16: #{conv2d_batchnorm_forward.1} parent=0 // pred_region
    _
  $region17: #{conv2d_batchnorm_forward.1} parent=0 // pred_fallthru
    _
  // Predicated region
  $region18: #{conv2d_batchnorm_forward.1} parent=0 // pred_check
    _
  $region19: #{conv2d_batchnorm_forward.1} parent=0 // pred_check_branch
    %19 = sbr.rel (0) target = $region21
  $region20: #{conv2d_batchnorm_forward.1} parent=0 // pred_region
    _
  $region21: #{conv2d_batchnorm_forward.1} parent=0 // pred_fallthru
    _
  %v23 = vlaneseq
  %v24 = vand.u32 %v23, 127
  %v25 = vadd.s32 %v24, 128
  %vm26 = vcmp.lt.s32.totalorder %v24, 0
  %v27 = vsub.s32 0, %v24
  %v28 = vsel %vm26, %v27, %v24
  %v29 = vshrl.u32 %v28, 4
  %v30 = vand.u32 %v28, 15
  %v31 = vsub.s32 0, %v30
  %v32 = vsel %vm26, %v31, %v30
  %vm33 = vcmp.lt.s32.totalorder %v25, 0
  %v34 = vsub.s32 0, %v25
  %v35 = vsel %vm33, %v34, %v25
  %v36 = vshrl.u32 %v35, 4
  %v37 = vand.u32 %v35, 15
  %v38 = vsub.s32 0, %v37
  %v39 = vsel %vm33, %v38, %v37
  %vm40 = vcmp.ne.s32.totalorder %v32, 0
  %vm41 = vcmp.ne.s32.totalorder %v39, 0
  %vm42 = vcmp.lt.s32.totalorder %v32, 0
  %vm43 = vcmp.lt.s32.totalorder %v39, 0
  %vm44 = vmand %vm42, %vm40
  %vm45 = vmand %vm43, %vm41
  %v46 = vadd.s32 %v32, 16
  %v47 = vadd.s32 %v39, 16
  %v48 = vsel %vm44, %v46, %v32
  %v49 = vsel %vm45, %v47, %v39
  %v50 = vadd.s32 %v48, 4294967295
  %v51 = vadd.s32 %v49, 4294967295
  %vm52 = vcmp.ge.s32.totalorder %v50, 0
  %vm53 = vcmp.ge.s32.totalorder %v51, 0
  %vm54 = vcmp.lt.s32.totalorder %v50, 16
  %vm55 = vcmp.lt.s32.totalorder %v51, 16
  %vm56 = vmand %vm52, %vm54
  %vm57 = vmand %vm53, %vm55
  %v58 = vadd.s32 %v48, 1
  %v59 = vadd.s32 %v49, 1
  %vm60 = vcmp.ge.s32.totalorder %v58, 0
  %vm61 = vcmp.ge.s32.totalorder %v59, 0
  %vm62 = vcmp.lt.s32.totalorder %v58, 16
  %vm63 = vcmp.lt.s32.totalorder %v59, 16
  %vm64 = vmand %vm60, %vm62
  %vm65 = vmand %vm61, %vm63
  %vm66 = vcmask 134144
  %67 = vst.msk [vmem:[#allocation2] sm:$0xf] %vm66, 0
  %68 = vst.msk [vmem:[#allocation2 + $0xc] sm:$0xf] %vm66, 0
  %vm69 = vcmask 273544
  %70 = vst.msk [vmem:[#allocation2 + $0x8] sm:$0xf] %vm69, 0
  %71 = vst.msk [vmem:[#allocation2 + $0x14] sm:$0xf] %vm69, 0
  %v72 = vld [vmem:[%s0] sm:$0xff]
  %v73 = vld [vmem:[%s0 + $0x8] sm:$0xff]
  %v74 = vld [vmem:[%s0 + $0x10] sm:$0xff]
  %v75 = vld [vmem:[%s0 + $0x18] sm:$0xff]
  %v76 = vpack.c.bf16 %v74, %v72
  %v77 = vpack.c.bf16 %v75, %v73
  %v80 = vunpack.c.l.b16 %v76
  %v81 = vunpack.c.l.b16 %v77
  %v82 = vunpack.c.h.b16 %v76
  %v83 = vunpack.c.h.b16 %v77
  %v84 = vpack.c.b16 %v81, %v80
  %v85 = vpack.c.b16 %v83, %v82
  %86 = vrot.lane.b32.xlu0 %v84, 17
  %v87 = vpop.permute.xlu0 %86
  %88 = vrot.lane.b32.xlu0 %v85, 17
  %v89 = vpop.permute.xlu0 %88
  %v90 = vrot.slane %v87, 4
  %v91 = vrot.slane %v89, 4
  %vm92 = vcmask 138240
  %v93 = vsel %vm92, %v90, %v87
  %v94 = vsel %vm92, %v91, %v89
  %vm99 = vcmask 1043592
  %vm100 = vcmask 1047556
  %vm101 = vmor %vm100, %vm99
  %102 = vst.msk [vmem:[#allocation2] sm:$0xff] %vm101, %v93
  %103 = vst.msk [vmem:[#allocation2 + $0x8] sm:$0xf] %vm66, %v90
  %104 = vst.msk [vmem:[#allocation2 + $0xc] sm:$0xff] %vm101, %v94
  %105 = vst.msk [vmem:[#allocation2 + $0x14] sm:$0xf] %vm66, %v91
  %v106 = vld [vmem:[#allocation2] sm:$0xff]
  %v107 = vld [vmem:[#allocation2 + $0xc] sm:$0xff]
  %v108 = vsel %vm56, 1, 0
  %v109 = vsel %vm57, 1, 0
  %vm110 = vcmp.eq.s32.totalorder %v108, 1
  %vm111 = vcmp.eq.s32.totalorder %v109, 1
  %vm112 = vmpackc.low %vm111, %vm110
  %v113 = vsel %vm112, %v106, 0
  %v114 = vsel %vm112, %v107, 0
  %115 = vst [vmem:[#allocation3] sm:$0xff] %v113
  %116 = vst [vmem:[#allocation3 + $0x10] sm:$0xff] %v114
  %v117 = vld [vmem:[#allocation2] sm:$0xff]
  %v118 = vld [vmem:[#allocation2 + $0x8] sm:$0xf]
  %v119 = vld [vmem:[#allocation2 + $0xc] sm:$0xff]
  %v120 = vld [vmem:[#allocation2 + $0x14] sm:$0xf]
  %125 = vrot.lane.b32.xlu0 %v117, 127
  %v126 = vpop.permute.xlu0 %125
  %127 = vrot.lane.b32.xlu0 %v118, 127
  %v128 = vpop.permute.xlu0 %127
  %129 = vrot.lane.b32.xlu0 %v119, 127
  %v130 = vpop.permute.xlu0 %129
  %131 = vrot.lane.b32.xlu0 %v120, 127
  %v132 = vpop.permute.xlu0 %131
  %v133 = vrot.slane %v126, 4
  %v134 = vrot.slane %v128, 4
  %v135 = vrot.slane %v130, 4
  %v136 = vrot.slane %v132, 4
  %vm137 = vcmask 1043456
  %v138 = vsel %vm137, %v133, %v134
  %vm139 = vcmask 1039360
  %v140 = vsel %vm139, %v126, %v138
  %v141 = vsel %vm137, %v135, %v136
  %v142 = vsel %vm139, %v130, %v141
  %145 = vst [vmem:[#allocation3 + $0x20] sm:$0xff] %v140
  %146 = vst [vmem:[#allocation3 + $0x30] sm:$0xff] %v142
  %v147 = vld [vmem:[#allocation2] sm:$0xff]
  %v148 = vld [vmem:[#allocation2 + $0x8] sm:$0xf]
  %v149 = vld [vmem:[#allocation2 + $0xc] sm:$0xff]
  %v150 = vld [vmem:[#allocation2 + $0x14] sm:$0xf]
  %v151 = vsel %vm64, 1, 0
  %v152 = vsel %vm65, 1, 0
  %vm153 = vcmp.eq.s32.totalorder %v151, 1
  %vm154 = vcmp.eq.s32.totalorder %v152, 1
  %vm155 = vmpackc.low %vm154, %vm153
  %v156 = vsel %vm155, 65537, 0
  %157 = vrot.lane.b32.xlu0 %v156, 2
  %v158 = vpop.permute.xlu0 %157
  %v159 = vrot.slane %v158, 4
  %vm160 = vcmask 15360
  %v161 = vsel %vm160, %v159, %v158
  %vm162 = vcmp.ne.s16.totalorder %v161, 0
  %vm163 = vcmp.ne.s16.totalorder %v159, 0
  %v164 = vsel %vm162, %v147, 0
  %v165 = vsel %vm163, %v148, 0
  %v166 = vsel %vm162, %v149, 0
  %v167 = vsel %vm163, %v150, 0
  %172 = vrot.lane.b32.xlu0 %v164, 126
  %v173 = vpop.permute.xlu0 %172
  %174 = vrot.lane.b32.xlu0 %v165, 126
  %v175 = vpop.permute.xlu0 %174
  %176 = vrot.lane.b32.xlu0 %v166, 126
  %v177 = vpop.permute.xlu0 %176
  %178 = vrot.lane.b32.xlu0 %v167, 126
  %v179 = vpop.permute.xlu0 %178
  %v180 = vrot.slane %v173, 4
  %v181 = vrot.slane %v175, 4
  %v182 = vrot.slane %v177, 4
  %v183 = vrot.slane %v179, 4
  %v184 = vsel %vm137, %v180, %v181
  %vm185 = vcmask 1031168
  %v186 = vsel %vm185, %v173, %v184
  %v187 = vsel %vm137, %v182, %v183
  %v188 = vsel %vm185, %v177, %v187
  %191 = vst [vmem:[#allocation3 + $0x40] sm:$0xff] %v186
  %192 = vst [vmem:[#allocation3 + $0x50] sm:$0xff] %v188
  %v193 = vld [vmem:[#allocation2] sm:$0xff]
  %v194 = vld [vmem:[#allocation2 + $0x8] sm:$0xf]
  %v195 = vld [vmem:[#allocation2 + $0xc] sm:$0xff]
  %v196 = vld [vmem:[#allocation2 + $0x14] sm:$0xf]
  %v197 = vsel %vm112, 65537, 0
  %198 = vrot.lane.b32.xlu0 %v197, 16
  %v199 = vpop.permute.xlu0 %198
  %v200 = vrot.slane %v199, 4
  %vm201 = vcmask 130048
  %v202 = vsel %vm201, %v200, %v199
  %vm203 = vcmp.ne.s16.totalorder %v202, 0
  %vm204 = vcmp.ne.s16.totalorder %v200, 0
  %v205 = vsel %vm203, %v193, 0
  %v206 = vsel %vm204, %v194, 0
  %v207 = vsel %vm203, %v195, 0
  %v208 = vsel %vm204, %v196, 0
  %213 = vrot.lane.b32.xlu0 %v205, 112
  %v214 = vpop.permute.xlu0 %213
  %215 = vrot.lane.b32.xlu0 %v206, 112
  %v216 = vpop.permute.xlu0 %215
  %217 = vrot.lane.b32.xlu0 %v207, 112
  %v218 = vpop.permute.xlu0 %217
  %219 = vrot.lane.b32.xlu0 %v208, 112
  %v220 = vpop.permute.xlu0 %219
  %v221 = vrot.slane %v214, 4
  %v222 = vrot.slane %v216, 4
  %v223 = vrot.slane %v218, 4
  %v224 = vrot.slane %v220, 4
  %v225 = vsel %vm137, %v221, %v222
  %vm226 = vcmask 916480
  %v227 = vsel %vm226, %v214, %v225
  %v228 = vsel %vm137, %v223, %v224
  %v229 = vsel %vm226, %v218, %v228
  %232 = vst [vmem:[#allocation3 + $0x60] sm:$0xff] %v227
  %233 = vst [vmem:[#allocation3 + $0x70] sm:$0xff] %v229
  %v234 = vld [vmem:[#allocation2] sm:$0xff]
  %v235 = vld [vmem:[#allocation2 + $0x8] sm:$0xf]
  %v236 = vld [vmem:[#allocation2 + $0xc] sm:$0xff]
  %v237 = vld [vmem:[#allocation2 + $0x14] sm:$0xf]
  %242 = vrot.lane.b32.xlu0 %v234, 111
  %v243 = vpop.permute.xlu0 %242
  %244 = vrot.lane.b32.xlu0 %v235, 111
  %v245 = vpop.permute.xlu0 %244
  %246 = vrot.lane.b32.xlu0 %v236, 111
  %v247 = vpop.permute.xlu0 %246
  %248 = vrot.lane.b32.xlu0 %v237, 111
  %v249 = vpop.permute.xlu0 %248
  %v250 = vrot.slane %v243, 4
  %v251 = vrot.slane %v245, 4
  %v252 = vrot.slane %v247, 4
  %v253 = vrot.slane %v249, 4
  %v254 = vsel %vm137, %v250, %v251
  %vm255 = vcmask 908288
  %v256 = vsel %vm255, %v243, %v254
  %v257 = vsel %vm137, %v252, %v253
  %v258 = vsel %vm255, %v247, %v257
  %261 = vst [vmem:[#allocation3 + $0x80] sm:$0xff] %v256
  %262 = vst [vmem:[#allocation3 + $0x90] sm:$0xff] %v258
  %v263 = vld [vmem:[#allocation2] sm:$0xff]
  %v264 = vld [vmem:[#allocation2 + $0x8] sm:$0xf]
  %v265 = vld [vmem:[#allocation2 + $0xc] sm:$0xff]
  %v266 = vld [vmem:[#allocation2 + $0x14] sm:$0xf]
  %267 = vrot.lane.b32.xlu0 %v156, 18
  %v268 = vpop.permute.xlu0 %267
  %v269 = vrot.slane %v268, 4
  %vm270 = vcmask 146432
  %v271 = vsel %vm270, %v269, %v268
  %vm272 = vcmp.ne.s16.totalorder %v271, 0
  %vm273 = vcmp.ne.s16.totalorder %v269, 0
  %v274 = vsel %vm272, %v263, 0
  %v275 = vsel %vm273, %v264, 0
  %v276 = vsel %vm272, %v265, 0
  %v277 = vsel %vm273, %v266, 0
  %282 = vrot.lane.b32.xlu0 %v274, 110
  %v283 = vpop.permute.xlu0 %282
  %284 = vrot.lane.b32.xlu0 %v275, 110
  %v285 = vpop.permute.xlu0 %284
  %286 = vrot.lane.b32.xlu0 %v276, 110
  %v287 = vpop.permute.xlu0 %286
  %288 = vrot.lane.b32.xlu0 %v277, 110
  %v289 = vpop.permute.xlu0 %288
  %v290 = vrot.slane %v283, 4
  %v291 = vrot.slane %v285, 4
  %v292 = vrot.slane %v287, 4
  %v293 = vrot.slane %v289, 4
  %v294 = vsel %vm137, %v290, %v291
  %vm295 = vcmask 900096
  %v296 = vsel %vm295, %v283, %v294
  %v297 = vsel %vm137, %v292, %v293
  %v298 = vsel %vm295, %v287, %v297
  %301 = vst [vmem:[#allocation3 + $0xa0] sm:$0xff] %v296
  %302 = vst [vmem:[#allocation3 + $0xb0] sm:$0xff] %v298
  %v303 = vld [vmem:[#allocation2] sm:$0xff]
  %v304 = vld [vmem:[#allocation2 + $0x8] sm:$0xf]
  %v305 = vld [vmem:[#allocation2 + $0xc] sm:$0xff]
  %v306 = vld [vmem:[#allocation2 + $0x14] sm:$0xf]
  %307 = vrot.lane.b32.xlu0 %v197, 32
  %v308 = vpop.permute.xlu0 %307
  %v309 = vrot.slane %v308, 4
  %vm310 = vcmask 261120
  %v311 = vsel %vm310, %v309, %v308
  %vm312 = vcmp.ne.s16.totalorder %v311, 0
  %vm313 = vcmp.ne.s16.totalorder %v309, 0
  %v314 = vsel %vm312, %v303, 0
  %v315 = vsel %vm313, %v304, 0
  %v316 = vsel %vm312, %v305, 0
  %v317 = vsel %vm313, %v306, 0
  %322 = vrot.lane.b32.xlu0 %v314, 96
  %v323 = vpop.permute.xlu0 %322
  %324 = vrot.lane.b32.xlu0 %v315, 96
  %v325 = vpop.permute.xlu0 %324
  %326 = vrot.lane.b32.xlu0 %v316, 96
  %v327 = vpop.permute.xlu0 %326
  %328 = vrot.lane.b32.xlu0 %v317, 96
  %v329 = vpop.permute.xlu0 %328
  %v330 = vrot.slane %v323, 4
  %v331 = vrot.slane %v325, 4
  %v332 = vrot.slane %v327, 4
  %v333 = vrot.slane %v329, 4
  %v334 = vsel %vm137, %v330, %v331
  %vm335 = vcmask 785408
  %v336 = vsel %vm335, %v323, %v334
  %v337 = vsel %vm137, %v332, %v333
  %v338 = vsel %vm335, %v327, %v337
  %341 = vst [vmem:[#allocation3 + $0xc0] sm:$0xff] %v336
  %342 = vst [vmem:[#allocation3 + $0xd0] sm:$0xff] %v338
  %v343 = vld [vmem:[#allocation2] sm:$0xff]
  %v344 = vld [vmem:[#allocation2 + $0x8] sm:$0xf]
  %v345 = vld [vmem:[#allocation2 + $0xc] sm:$0xff]
  %v346 = vld [vmem:[#allocation2 + $0x14] sm:$0xf]
  %351 = vrot.lane.b32.xlu0 %v343, 95
  %v352 = vpop.permute.xlu0 %351
  %353 = vrot.lane.b32.xlu0 %v344, 95
  %v354 = vpop.permute.xlu0 %353
  %355 = vrot.lane.b32.xlu0 %v345, 95
  %v356 = vpop.permute.xlu0 %355
  %357 = vrot.lane.b32.xlu0 %v346, 95
  %v358 = vpop.permute.xlu0 %357
  %v359 = vrot.slane %v352, 4
  %v360 = vrot.slane %v354, 4
  %v361 = vrot.slane %v356, 4
  %v362 = vrot.slane %v358, 4
  %v363 = vsel %vm137, %v359, %v360
  %vm364 = vcmask 777216
  %v365 = vsel %vm364, %v352, %v363
  %v366 = vsel %vm137, %v361, %v362
  %v367 = vsel %vm364, %v356, %v366
  %370 = vst [vmem:[#allocation3 + $0xe0] sm:$0xff] %v365
  %371 = vst [vmem:[#allocation3 + $0xf0] sm:$0xff] %v367
  %v372 = vld [vmem:[#allocation2] sm:$0xff]
  %v373 = vld [vmem:[#allocation2 + $0x8] sm:$0xf]
  %v374 = vld [vmem:[#allocation2 + $0xc] sm:$0xff]
  %v375 = vld [vmem:[#allocation2 + $0x14] sm:$0xf]
  %376 = vrot.lane.b32.xlu0 %v156, 34
  %v377 = vpop.permute.xlu0 %376
  %v378 = vrot.slane %v377, 4
  %vm379 = vcmask 277504
  %v380 = vsel %vm379, %v378, %v377
  %vm381 = vcmp.ne.s16.totalorder %v380, 0
  %vm382 = vcmp.ne.s16.totalorder %v378, 0
  %v383 = vsel %vm381, %v372, 0
  %v384 = vsel %vm382, %v373, 0
  %v385 = vsel %vm381, %v374, 0
  %v386 = vsel %vm382, %v375, 0
  %391 = vrot.lane.b32.xlu0 %v383, 94
  %v392 = vpop.permute.xlu0 %391
  %393 = vrot.lane.b32.xlu0 %v384, 94
  %v394 = vpop.permute.xlu0 %393
  %395 = vrot.lane.b32.xlu0 %v385, 94
  %v396 = vpop.permute.xlu0 %395
  %397 = vrot.lane.b32.xlu0 %v386, 94
  %v398 = vpop.permute.xlu0 %397
  %v399 = vrot.slane %v392, 4
  %v400 = vrot.slane %v394, 4
  %v401 = vrot.slane %v396, 4
  %v402 = vrot.slane %v398, 4
  %v403 = vsel %vm137, %v399, %v400
  %vm404 = vcmask 769024
  %v405 = vsel %vm404, %v392, %v403
  %v406 = vsel %vm137, %v401, %v402
  %v407 = vsel %vm404, %v396, %v406
  %410 = vst [vmem:[#allocation3 + $0x100] sm:$0xff] %v405
  %411 = vst [vmem:[#allocation3 + $0x110] sm:$0xff] %v407
  %s412 = scalar_lea.vmem %s0, 32
  %v413 = vld [vmem:[%s412] sm:$0xff]
  %v414 = vld [vmem:[%s412 + $0x8] sm:$0xff]
  %v415 = vld [vmem:[%s412 + $0x10] sm:$0xff]
  %v416 = vld [vmem:[%s412 + $0x18] sm:$0xff]
  %v417 = vpack.c.bf16 %v415, %v413
  %v418 = vpack.c.bf16 %v416, %v414
  %v421 = vunpack.c.l.b16 %v417
  %v422 = vunpack.c.l.b16 %v418
  %v423 = vunpack.c.h.b16 %v417
  %v424 = vunpack.c.h.b16 %v418
  %v425 = vpack.c.b16 %v422, %v421
  %v426 = vpack.c.b16 %v424, %v423
  %427 = vrot.lane.b32.xlu0 %v425, 17
  %v428 = vpop.permute.xlu0 %427
  %429 = vrot.lane.b32.xlu0 %v426, 17
  %v430 = vpop.permute.xlu0 %429
  %v431 = vrot.slane %v428, 4
  %v432 = vrot.slane %v430, 4
  %v433 = vsel %vm92, %v431, %v428
  %v434 = vsel %vm92, %v432, %v430
  %439 = vst.msk [vmem:[#allocation2] sm:$0xff] %vm101, %v433
  %440 = vst.msk [vmem:[#allocation2 + $0x8] sm:$0xf] %vm66, %v431
  %441 = vst.msk [vmem:[#allocation2 + $0xc] sm:$0xff] %vm101, %v434
  %442 = vst.msk [vmem:[#allocation2 + $0x14] sm:$0xf] %vm66, %v432
  %v443 = vld [vmem:[#allocation2] sm:$0xff]
  %v444 = vld [vmem:[#allocation2 + $0xc] sm:$0xff]
  %v445 = vsel %vm112, %v443, 0
  %v446 = vsel %vm112, %v444, 0
  %447 = vst [vmem:[#allocation3 + $0x8] sm:$0xff] %v445
  %448 = vst [vmem:[#allocation3 + $0x18] sm:$0xff] %v446
  %v449 = vld [vmem:[#allocation2] sm:$0xff]
  %v450 = vld [vmem:[#allocation2 + $0x8] sm:$0xf]
  %v451 = vld [vmem:[#allocation2 + $0xc] sm:$0xff]
  %v452 = vld [vmem:[#allocation2 + $0x14] sm:$0xf]
  %457 = vrot.lane.b32.xlu0 %v449, 127
  %v458 = vpop.permute.xlu0 %457
  %459 = vrot.lane.b32.xlu0 %v450, 127
  %v460 = vpop.permute.xlu0 %459
  %461 = vrot.lane.b32.xlu0 %v451, 127
  %v462 = vpop.permute.xlu0 %461
  %463 = vrot.lane.b32.xlu0 %v452, 127
  %v464 = vpop.permute.xlu0 %463
  %v465 = vrot.slane %v458, 4
  %v466 = vrot.slane %v460, 4
  %v467 = vrot.slane %v462, 4
  %v468 = vrot.slane %v464, 4
  %v469 = vsel %vm137, %v465, %v466
  %v470 = vsel %vm139, %v458, %v469
  %v471 = vsel %vm137, %v467, %v468
  %v472 = vsel %vm139, %v462, %v471
  %475 = vst [vmem:[#allocation3 + $0x28] sm:$0xff] %v470
  %476 = vst [vmem:[#allocation3 + $0x38] sm:$0xff] %v472
  %v477 = vld [vmem:[#allocation2] sm:$0xff]
  %v478 = vld [vmem:[#allocation2 + $0x8] sm:$0xf]
  %v479 = vld [vmem:[#allocation2 + $0xc] sm:$0xff]
  %v480 = vld [vmem:[#allocation2 + $0x14] sm:$0xf]
  %v481 = vsel %vm162, %v477, 0
  %v482 = vsel %vm163, %v478, 0
  %v483 = vsel %vm162, %v479, 0
  %v484 = vsel %vm163, %v480, 0
  %489 = vrot.lane.b32.xlu0 %v481, 126
  %v490 = vpop.permute.xlu0 %489
  %491 = vrot.lane.b32.xlu0 %v482, 126
  %v492 = vpop.permute.xlu0 %491
  %493 = vrot.lane.b32.xlu0 %v483, 126
  %v494 = vpop.permute.xlu0 %493
  %495 = vrot.lane.b32.xlu0 %v484, 126
  %v496 = vpop.permute.xlu0 %495
  %v497 = vrot.slane %v490, 4
  %v498 = vrot.slane %v492, 4
  %v499 = vrot.slane %v494, 4
  %v500 = vrot.slane %v496, 4
  %v501 = vsel %vm137, %v497, %v498
  %v502 = vsel %vm185, %v490, %v501
  %v503 = vsel %vm137, %v499, %v500
  %v504 = vsel %vm185, %v494, %v503
  %507 = vst [vmem:[#allocation3 + $0x48] sm:$0xff] %v502
  %508 = vst [vmem:[#allocation3 + $0x58] sm:$0xff] %v504
  %v509 = vld [vmem:[#allocation2] sm:$0xff]
  %v510 = vld [vmem:[#allocation2 + $0x8] sm:$0xf]
  %v511 = vld [vmem:[#allocation2 + $0xc] sm:$0xff]
  %v512 = vld [vmem:[#allocation2 + $0x14] sm:$0xf]
  %v513 = vsel %vm203, %v509, 0
  %v514 = vsel %vm204, %v510, 0
  %v515 = vsel %vm203, %v511, 0
  %v516 = vsel %vm204, %v512, 0
  %521 = vrot.lane.b32.xlu0 %v513, 112
  %v522 = vpop.permute.xlu0 %521
  %523 = vrot.lane.b32.xlu0 %v514, 112
  %v524 = vpop.permute.xlu0 %523
  %525 = vrot.lane.b32.xlu0 %v515, 112
  %v526 = vpop.permute.xlu0 %525
  %527 = vrot.lane.b32.xlu0 %v516, 112
  %v528 = vpop.permute.xlu0 %527
  %v529 = vrot.slane %v522, 4
  %v530 = vrot.slane %v524, 4
  %v531 = vrot.slane %v526, 4
  %v532 = vrot.slane %v528, 4
  %v533 = vsel %vm137, %v529, %v530
  %v534 = vsel %vm226, %v522, %v533
  %v535 = vsel %vm137, %v531, %v532
  %v536 = vsel %vm226, %v526, %v535
  %539 = vst [vmem:[#allocation3 + $0x68] sm:$0xff] %v534
  %540 = vst [vmem:[#allocation3 + $0x78] sm:$0xff] %v536
  %v541 = vld [vmem:[#allocation2] sm:$0xff]
  %v542 = vld [vmem:[#allocation2 + $0x8] sm:$0xf]
  %v543 = vld [vmem:[#allocation2 + $0xc] sm:$0xff]
  %v544 = vld [vmem:[#allocation2 + $0x14] sm:$0xf]
  %549 = vrot.lane.b32.xlu0 %v541, 111
  %v550 = vpop.permute.xlu0 %549
  %551 = vrot.lane.b32.xlu0 %v542, 111
  %v552 = vpop.permute.xlu0 %551
  %553 = vrot.lane.b32.xlu0 %v543, 111
  %v554 = vpop.permute.xlu0 %553
  %555 = vrot.lane.b32.xlu0 %v544, 111
  %v556 = vpop.permute.xlu0 %555
  %v557 = vrot.slane %v550, 4
  %v558 = vrot.slane %v552, 4
  %v559 = vrot.slane %v554, 4
  %v560 = vrot.slane %v556, 4
  %v561 = vsel %vm137, %v557, %v558
  %v562 = vsel %vm255, %v550, %v561
  %v563 = vsel %vm137, %v559, %v560
  %v564 = vsel %vm255, %v554, %v563
  %567 = vst [vmem:[#allocation3 + $0x88] sm:$0xff] %v562
  %568 = vst [vmem:[#allocation3 + $0x98] sm:$0xff] %v564
  %v569 = vld [vmem:[#allocation2] sm:$0xff]
  %v570 = vld [vmem:[#allocation2 + $0x8] sm:$0xf]
  %v571 = vld [vmem:[#allocation2 + $0xc] sm:$0xff]
  %v572 = vld [vmem:[#allocation2 + $0x14] sm:$0xf]
  %v573 = vsel %vm272, %v569, 0
  %v574 = vsel %vm273, %v570, 0
  %v575 = vsel %vm272, %v571, 0
  %v576 = vsel %vm273, %v572, 0
  %581 = vrot.lane.b32.xlu0 %v573, 110
  %v582 = vpop.permute.xlu0 %581
  %583 = vrot.lane.b32.xlu0 %v574, 110
  %v584 = vpop.permute.xlu0 %583
  %585 = vrot.lane.b32.xlu0 %v575, 110
  %v586 = vpop.permute.xlu0 %585
  %587 = vrot.lane.b32.xlu0 %v576, 110
  %v588 = vpop.permute.xlu0 %587
  %v589 = vrot.slane %v582, 4
  %v590 = vrot.slane %v584, 4
  %v591 = vrot.slane %v586, 4
  %v592 = vrot.slane %v588, 4
  %v593 = vsel %vm137, %v589, %v590
  %v594 = vsel %vm295, %v582, %v593
  %v595 = vsel %vm137, %v591, %v592
  %v596 = vsel %vm295, %v586, %v595
  %599 = vst [vmem:[#allocation3 + $0xa8] sm:$0xff] %v594
  %600 = vst [vmem:[#allocation3 + $0xb8] sm:$0xff] %v596
  %v601 = vld [vmem:[#allocation2] sm:$0xff]
  %v602 = vld [vmem:[#allocation2 + $0x8] sm:$0xf]
  %v603 = vld [vmem:[#allocation2 + $0xc] sm:$0xff]
  %v604 = vld [vmem:[#allocation2 + $0x14] sm:$0xf]
  %v605 = vsel %vm312, %v601, 0
  %v606 = vsel %vm313, %v602, 0
  %v607 = vsel %vm312, %v603, 0
  %v608 = vsel %vm313, %v604, 0
  %613 = vrot.lane.b32.xlu0 %v605, 96
  %v614 = vpop.permute.xlu0 %613
  %615 = vrot.lane.b32.xlu0 %v606, 96
  %v616 = vpop.permute.xlu0 %615
  %617 = vrot.lane.b32.xlu0 %v607, 96
  %v618 = vpop.permute.xlu0 %617
  %619 = vrot.lane.b32.xlu0 %v608, 96
  %v620 = vpop.permute.xlu0 %619
  %v621 = vrot.slane %v614, 4
  %v622 = vrot.slane %v616, 4
  %v623 = vrot.slane %v618, 4
  %v624 = vrot.slane %v620, 4
  %v625 = vsel %vm137, %v621, %v622
  %v626 = vsel %vm335, %v614, %v625
  %v627 = vsel %vm137, %v623, %v624
  %v628 = vsel %vm335, %v618, %v627
  %631 = vst [vmem:[#allocation3 + $0xc8] sm:$0xff] %v626
  %632 = vst [vmem:[#allocation3 + $0xd8] sm:$0xff] %v628
  %v633 = vld [vmem:[#allocation2] sm:$0xff]
  %v634 = vld [vmem:[#allocation2 + $0x8] sm:$0xf]
  %v635 = vld [vmem:[#allocation2 + $0xc] sm:$0xff]
  %v636 = vld [vmem:[#allocation2 + $0x14] sm:$0xf]
  %641 = vrot.lane.b32.xlu0 %v633, 95
  %v642 = vpop.permute.xlu0 %641
  %643 = vrot.lane.b32.xlu0 %v634, 95
  %v644 = vpop.permute.xlu0 %643
  %645 = vrot.lane.b32.xlu0 %v635, 95
  %v646 = vpop.permute.xlu0 %645
  %647 = vrot.lane.b32.xlu0 %v636, 95
  %v648 = vpop.permute.xlu0 %647
  %v649 = vrot.slane %v642, 4
  %v650 = vrot.slane %v644, 4
  %v651 = vrot.slane %v646, 4
  %v652 = vrot.slane %v648, 4
  %v653 = vsel %vm137, %v649, %v650
  %v654 = vsel %vm364, %v642, %v653
  %v655 = vsel %vm137, %v651, %v652
  %v656 = vsel %vm364, %v646, %v655
  %659 = vst [vmem:[#allocation3 + $0xe8] sm:$0xff] %v654
  %660 = vst [vmem:[#allocation3 + $0xf8] sm:$0xff] %v656
  %v661 = vld [vmem:[#allocation2] sm:$0xff]
  %v662 = vld [vmem:[#allocation2 + $0x8] sm:$0xf]
  %v663 = vld [vmem:[#allocation2 + $0xc] sm:$0xff]
  %v664 = vld [vmem:[#allocation2 + $0x14] sm:$0xf]
  %v665 = vsel %vm381, %v661, 0
  %v666 = vsel %vm382, %v662, 0
  %v667 = vsel %vm381, %v663, 0
  %v668 = vsel %vm382, %v664, 0
  %673 = vrot.lane.b32.xlu0 %v665, 94
  %v674 = vpop.permute.xlu0 %673
  %675 = vrot.lane.b32.xlu0 %v666, 94
  %v676 = vpop.permute.xlu0 %675
  %677 = vrot.lane.b32.xlu0 %v667, 94
  %v678 = vpop.permute.xlu0 %677
  %679 = vrot.lane.b32.xlu0 %v668, 94
  %v680 = vpop.permute.xlu0 %679
  %v681 = vrot.slane %v674, 4
  %v682 = vrot.slane %v676, 4
  %v683 = vrot.slane %v678, 4
  %v684 = vrot.slane %v680, 4
  %v685 = vsel %vm137, %v681, %v682
  %v686 = vsel %vm404, %v674, %v685
  %v687 = vsel %vm137, %v683, %v684
  %v688 = vsel %vm404, %v678, %v687
  %691 = vst [vmem:[#allocation3 + $0x108] sm:$0xff] %v686
  %692 = vst [vmem:[#allocation3 + $0x118] sm:$0xff] %v688
  %v693 = vld [vmem:[%s1] sm:$0xff]
  %v694 = vld [vmem:[%s1 + $0x8] sm:$0xff]
  %v695 = vld [vmem:[%s1 + $0x10] sm:$0xff]
  %v696 = vld [vmem:[#allocation3] sm:$0xff]
  %v697 = vld [vmem:[#allocation3 + $0x8] sm:$0xff]
  %v698 = vld [vmem:[#allocation3 + $0x10] sm:$0xff]
  %v699 = vld [vmem:[#allocation3 + $0x18] sm:$0xff]
  %v700 = vld [vmem:[#allocation3 + $0x20] sm:$0xff]
  %v701 = vld [vmem:[#allocation3 + $0x28] sm:$0xff]
  %v702 = vld [vmem:[#allocation3 + $0x30] sm:$0xff]
  %v703 = vld [vmem:[#allocation3 + $0x38] sm:$0xff]
  %v704 = vld [vmem:[#allocation3 + $0x40] sm:$0xff]
  %v705 = vld [vmem:[#allocation3 + $0x48] sm:$0xff]
  %v706 = vld [vmem:[#allocation3 + $0x50] sm:$0xff]
  %v707 = vld [vmem:[#allocation3 + $0x58] sm:$0xff]
  %v708 = vld [vmem:[#allocation3 + $0x60] sm:$0xff]
  %v709 = vld [vmem:[#allocation3 + $0x68] sm:$0xff]
  %v710 = vld [vmem:[#allocation3 + $0x70] sm:$0xff]
  %v711 = vld [vmem:[#allocation3 + $0x78] sm:$0xff]
  %v712 = vld [vmem:[#allocation3 + $0x80] sm:$0xff]
  %v713 = vld [vmem:[#allocation3 + $0x88] sm:$0xff]
  %v714 = vld [vmem:[#allocation3 + $0x90] sm:$0xff]
  %v715 = vld [vmem:[#allocation3 + $0x98] sm:$0xff]
  %v716 = vld [vmem:[#allocation3 + $0xa0] sm:$0xff]
  %v717 = vld [vmem:[#allocation3 + $0xa8] sm:$0xff]
  %v718 = vld [vmem:[#allocation3 + $0xb0] sm:$0xff]
  %v719 = vld [vmem:[#allocation3 + $0xb8] sm:$0xff]
  %v720 = vld [vmem:[#allocation3 + $0xc0] sm:$0xff]
  %v721 = vld [vmem:[#allocation3 + $0xc8] sm:$0xff]
  %v722 = vld [vmem:[#allocation3 + $0xd0] sm:$0xff]
  %v723 = vld [vmem:[#allocation3 + $0xd8] sm:$0xff]
  %v724 = vld [vmem:[#allocation3 + $0xe0] sm:$0xff]
  %v725 = vld [vmem:[#allocation3 + $0xe8] sm:$0xff]
  %v726 = vld [vmem:[#allocation3 + $0xf0] sm:$0xff]
  %v727 = vld [vmem:[#allocation3 + $0xf8] sm:$0xff]
  %v728 = vld [vmem:[#allocation3 + $0x100] sm:$0xff]
  %v729 = vld [vmem:[#allocation3 + $0x108] sm:$0xff]
  %v730 = vld [vmem:[#allocation3 + $0x110] sm:$0xff]
  %v731 = vld [vmem:[#allocation3 + $0x118] sm:$0xff]
  %v735 = vunpack.c.l.b16 %v693
  %v736 = vunpack.c.h.b16 %v693
  %v737 = vunpack.c.l.b16 %v694
  %v738 = vunpack.c.h.b16 %v694
  %v739 = vunpack.c.l.b16 %v695
  %v740 = vunpack.c.h.b16 %v695
  %v741 = vpack.c.b16 %v737, %v735
  %v742 = vpack.c.b16 %v738, %v736
  %v743 = vpack.c.b16 %v739, %v739
  %v744 = vpack.c.b16 %v740, %v740
  %v783 = vunpack.c.l.b16 %v696
  %v784 = vunpack.c.h.b16 %v696
  %v785 = vunpack.c.l.b16 %v697
  %v786 = vunpack.c.h.b16 %v697
  %v787 = vunpack.c.l.b16 %v698
  %v788 = vunpack.c.h.b16 %v698
  %v789 = vunpack.c.l.b16 %v699
  %v790 = vunpack.c.h.b16 %v699
  %v791 = vunpack.c.l.b16 %v700
  %v792 = vunpack.c.h.b16 %v700
  %v793 = vunpack.c.l.b16 %v701
  %v794 = vunpack.c.h.b16 %v701
  %v795 = vunpack.c.l.b16 %v702
  %v796 = vunpack.c.h.b16 %v702
  %v797 = vunpack.c.l.b16 %v703
  %v798 = vunpack.c.h.b16 %v703
  %v799 = vunpack.c.l.b16 %v704
  %v800 = vunpack.c.h.b16 %v704
  %v801 = vunpack.c.l.b16 %v705
  %v802 = vunpack.c.h.b16 %v705
  %v803 = vunpack.c.l.b16 %v706
  %v804 = vunpack.c.h.b16 %v706
  %v805 = vunpack.c.l.b16 %v707
  %v806 = vunpack.c.h.b16 %v707
  %v807 = vunpack.c.l.b16 %v708
  %v808 = vunpack.c.h.b16 %v708
  %v809 = vunpack.c.l.b16 %v709
  %v810 = vunpack.c.h.b16 %v709
  %v811 = vunpack.c.l.b16 %v710
  %v812 = vunpack.c.h.b16 %v710
  %v813 = vunpack.c.l.b16 %v711
  %v814 = vunpack.c.h.b16 %v711
  %v815 = vunpack.c.l.b16 %v712
  %v816 = vunpack.c.h.b16 %v712
  %v817 = vunpack.c.l.b16 %v713
  %v818 = vunpack.c.h.b16 %v713
  %v819 = vunpack.c.l.b16 %v714
  %v820 = vunpack.c.h.b16 %v714
  %v821 = vunpack.c.l.b16 %v715
  %v822 = vunpack.c.h.b16 %v715
  %v823 = vunpack.c.l.b16 %v716
  %v824 = vunpack.c.h.b16 %v716
  %v825 = vunpack.c.l.b16 %v717
  %v826 = vunpack.c.h.b16 %v717
  %v827 = vunpack.c.l.b16 %v718
  %v828 = vunpack.c.h.b16 %v718
  %v829 = vunpack.c.l.b16 %v719
  %v830 = vunpack.c.h.b16 %v719
  %v831 = vunpack.c.l.b16 %v720
  %v832 = vunpack.c.h.b16 %v720
  %v833 = vunpack.c.l.b16 %v721
  %v834 = vunpack.c.h.b16 %v721
  %v835 = vunpack.c.l.b16 %v722
  %v836 = vunpack.c.h.b16 %v722
  %v837 = vunpack.c.l.b16 %v723
  %v838 = vunpack.c.h.b16 %v723
  %v839 = vunpack.c.l.b16 %v724
  %v840 = vunpack.c.h.b16 %v724
  %v841 = vunpack.c.l.b16 %v725
  %v842 = vunpack.c.h.b16 %v725
  %v843 = vunpack.c.l.b16 %v726
  %v844 = vunpack.c.h.b16 %v726
  %v845 = vunpack.c.l.b16 %v727
  %v846 = vunpack.c.h.b16 %v727
  %v847 = vunpack.c.l.b16 %v728
  %v848 = vunpack.c.h.b16 %v728
  %v849 = vunpack.c.l.b16 %v729
  %v850 = vunpack.c.h.b16 %v729
  %v851 = vunpack.c.l.b16 %v730
  %v852 = vunpack.c.h.b16 %v730
  %v853 = vunpack.c.l.b16 %v731
  %v854 = vunpack.c.h.b16 %v731
  %v855 = vpack.c.b16 %v787, %v783
  %v856 = vpack.c.b16 %v788, %v784
  %v857 = vpack.c.b16 %v789, %v785
  %v858 = vpack.c.b16 %v790, %v786
  %v859 = vpack.c.b16 %v795, %v791
  %v860 = vpack.c.b16 %v796, %v792
  %v861 = vpack.c.b16 %v797, %v793
  %v862 = vpack.c.b16 %v798, %v794
  %v863 = vpack.c.b16 %v803, %v799
  %v864 = vpack.c.b16 %v804, %v800
  %v865 = vpack.c.b16 %v805, %v801
  %v866 = vpack.c.b16 %v806, %v802
  %v867 = vpack.c.b16 %v811, %v807
  %v868 = vpack.c.b16 %v812, %v808
  %v869 = vpack.c.b16 %v813, %v809
  %v870 = vpack.c.b16 %v814, %v810
  %v871 = vpack.c.b16 %v819, %v815
  %v872 = vpack.c.b16 %v820, %v816
  %v873 = vpack.c.b16 %v821, %v817
  %v874 = vpack.c.b16 %v822, %v818
  %v875 = vpack.c.b16 %v827, %v823
  %v876 = vpack.c.b16 %v828, %v824
  %v877 = vpack.c.b16 %v829, %v825
  %v878 = vpack.c.b16 %v830, %v826
  %v879 = vpack.c.b16 %v835, %v831
  %v880 = vpack.c.b16 %v836, %v832
  %v881 = vpack.c.b16 %v837, %v833
  %v882 = vpack.c.b16 %v838, %v834
  %v883 = vpack.c.b16 %v843, %v839
  %v884 = vpack.c.b16 %v844, %v840
  %v885 = vpack.c.b16 %v845, %v841
  %v886 = vpack.c.b16 %v846, %v842
  %v887 = vpack.c.b16 %v851, %v847
  %v888 = vpack.c.b16 %v852, %v848
  %v889 = vpack.c.b16 %v853, %v849
  %v890 = vpack.c.b16 %v854, %v850
  %vm927 = vcmask 130048
  %v929 = vsel %vm927, %v742, 0
  %v932 = vsel %vm927, %v744, 0
  %934 = vmatprep.subr.bf16.mxu0 %v884
  %935 = vmatpush1.bf16.msra.mxu0 %v883
  %936 = vmatprep.subr.bf16.mxu0 %v880
  %937 = vmatpush1.bf16.msra.mxu0 %v879
  %938 = vmatprep.subr.bf16.mxu0 %v876
  %939 = vmatpush1.bf16.msra.mxu0 %v875
  %940 = vmatprep.subr.bf16.mxu0 %v872
  %941 = vmatpush1.bf16.msra.mxu0 %v871
  %942 = vmatprep.subr.bf16.mxu0 %v868
  %943 = vmatpush1.bf16.msra.mxu0 %v867
  %944 = vmatprep.subr.bf16.mxu0 %v864
  %945 = vmatpush1.bf16.msra.mxu0 %v863
  %946 = vmatprep.subr.bf16.mxu0 %v860
  %947 = vmatpush1.bf16.msra.mxu0 %v859
  %948 = vmatprep.subr.bf16.mxu0 %v856
  %949 = vmatpush1.bf16.msra.mxu0 %v855
  %950 = vmatprep.subr.bf16.mxu0 0
  %951 = vmatpush2.bf16.msra.mxu0 0
  %952 = vmatprep.subr.bf16.mxu0 0
  %953 = vmatpush2.bf16.msra.mxu0 0
  %954 = vmatprep.subr.bf16.mxu0 0
  %955 = vmatpush2.bf16.msra.mxu0 0
  %956 = vmatprep.subr.bf16.mxu0 0
  %957 = vmatpush2.bf16.msra.mxu0 0
  %958 = vmatprep.subr.bf16.mxu0 0
  %959 = vmatpush2.bf16.msra.mxu0 0
  %960 = vmatprep.subr.bf16.mxu0 0
  %961 = vmatpush2.bf16.msra.mxu0 0
  %962 = vmatprep.subr.bf16.mxu0 0
  %963 = vmatpush2.bf16.msra.mxu0 0
  %964 = vmatprep.subr.bf16.mxu0 %v888
  %965 = vmatpush2.bf16.msra.mxu0 %v887
  %966 = vmatprep.mubr.bf16.mxu0 %v929
  %967 = vmatmul.mubr.bf16.gmra.mxu0 %v741
  %v968 = vpop.f32.mrf.mxu0
  %v969 = vadd.f32 0.0, %v968
  %v970 = vpop.f32.mrf.mxu0
  %v971 = vadd.f32 0.0, %v970
  %v972 = vpop.f32.mrf.mxu0
  %v973 = vadd.f32 0.0, %v972
  %v974 = vpop.f32.mrf.mxu0
  %v975 = vadd.f32 0.0, %v974
  %976 = vmatprep.mubr.bf16.mxu0 %v932
  %977 = vmatmul.mubr.bf16.gmra.mxu0 %v743
  %v978 = vpop.f32.mrf.mxu0
  %v979 = vadd.f32 0.0, %v978
  %v980 = vpop.f32.mrf.mxu0
  %v981 = vadd.f32 0.0, %v980
  %v982 = vpop.f32.mrf.mxu0
  %v983 = vpop.f32.mrf.mxu0
  %984 = vdwg.mxu0
  %985 = vmatprep.subr.bf16.mxu0 %v886
  %986 = vmatpush1.bf16.msra.mxu0 %v885
  %987 = vmatprep.subr.bf16.mxu0 %v882
  %988 = vmatpush1.bf16.msra.mxu0 %v881
  %989 = vmatprep.subr.bf16.mxu0 %v878
  %990 = vmatpush1.bf16.msra.mxu0 %v877
  %991 = vmatprep.subr.bf16.mxu0 %v874
  %992 = vmatpush1.bf16.msra.mxu0 %v873
  %993 = vmatprep.subr.bf16.mxu0 %v870
  %994 = vmatpush1.bf16.msra.mxu0 %v869
  %995 = vmatprep.subr.bf16.mxu0 %v866
  %996 = vmatpush1.bf16.msra.mxu0 %v865
  %997 = vmatprep.subr.bf16.mxu0 %v862
  %998 = vmatpush1.bf16.msra.mxu0 %v861
  %999 = vmatprep.subr.bf16.mxu0 %v858
  %1000 = vmatpush1.bf16.msra.mxu0 %v857
  %1001 = vmatprep.subr.bf16.mxu0 0
  %1002 = vmatpush2.bf16.msra.mxu0 0
  %1003 = vmatprep.subr.bf16.mxu0 0
  %1004 = vmatpush2.bf16.msra.mxu0 0
  %1005 = vmatprep.subr.bf16.mxu0 0
  %1006 = vmatpush2.bf16.msra.mxu0 0
  %1007 = vmatprep.subr.bf16.mxu0 0
  %1008 = vmatpush2.bf16.msra.mxu0 0
  %1009 = vmatprep.subr.bf16.mxu0 0
  %1010 = vmatpush2.bf16.msra.mxu0 0
  %1011 = vmatprep.subr.bf16.mxu0 0
  %1012 = vmatpush2.bf16.msra.mxu0 0
  %1013 = vmatprep.subr.bf16.mxu0 0
  %1014 = vmatpush2.bf16.msra.mxu0 0
  %1015 = vmatprep.subr.bf16.mxu0 %v890
  %1016 = vmatpush2.bf16.msra.mxu0 %v889
  %1017 = vmatprep.mubr.bf16.mxu0 %v929
  %1018 = vmatmul.mubr.bf16.gmra.mxu0 %v741
  %v1019 = vpop.f32.mrf.mxu0
  %v1020 = vadd.f32 0.0, %v1019
  %v1021 = vpop.f32.mrf.mxu0
  %v1022 = vadd.f32 0.0, %v1021
  %v1023 = vpop.f32.mrf.mxu0
  %v1024 = vadd.f32 0.0, %v1023
  %v1025 = vpop.f32.mrf.mxu0
  %v1026 = vadd.f32 0.0, %v1025
  %1027 = vmatprep.mubr.bf16.mxu0 %v932
  %1028 = vmatmul.mubr.bf16.gmra.mxu0 %v743
  %v1029 = vpop.f32.mrf.mxu0
  %v1030 = vadd.f32 0.0, %v1029
  %v1031 = vpop.f32.mrf.mxu0
  %v1032 = vadd.f32 0.0, %v1031
  %v1033 = vpop.f32.mrf.mxu0
  %v1034 = vpop.f32.mrf.mxu0
  %1035 = vdwg.mxu0
  %v1036 = vld [vmem:[%s2] sm:$0xff]
  %v1037 = vld [vmem:[%s2 + $0x8] sm:$0xff]
  %v1038 = vld [vmem:[%s2 + $0x10] sm:$0xff]
  %1040 = vset.pattern.permute.xlu0 0
  %1041 = vperm.xlu0 %1040, %v1036
  %v1042 = vpop.permute.xlu0 %1041
  %1045 = vset.pattern.permute.xlu0 0
  %1046 = vperm.xlu0 %1045, %v1037
  %v1047 = vpop.permute.xlu0 %1046
  %1050 = vset.pattern.permute.xlu0 0
  %1051 = vperm.xlu0 %1050, %v1038
  %v1052 = vpop.permute.xlu0 %1051
  %v1054 = vmul.f32 %v969, %v1042
  %v1055 = vmul.f32 %v971, %v1042
  %v1056 = vmul.f32 %v1020, %v1042
  %v1057 = vmul.f32 %v1022, %v1042
  %v1058 = vmul.f32 %v973, %v1047
  %v1059 = vmul.f32 %v975, %v1047
  %v1060 = vmul.f32 %v1024, %v1047
  %v1061 = vmul.f32 %v1026, %v1047
  %v1062 = vmul.f32 %v979, %v1052
  %v1063 = vmul.f32 %v981, %v1052
  %v1064 = vmul.f32 %v1030, %v1052
  %v1065 = vmul.f32 %v1032, %v1052
  %1066 = vset.pattern.permute.xlu0 1
  %1067 = vperm.xlu0 %1066, %v1036
  %v1068 = vpop.permute.xlu0 %1067
  %1070 = vset.pattern.permute.xlu0 1
  %1071 = vperm.xlu0 %1070, %v1037
  %v1072 = vpop.permute.xlu0 %1071
  %1074 = vset.pattern.permute.xlu0 1
  %1075 = vperm.xlu0 %1074, %v1038
  %v1076 = vpop.permute.xlu0 %1075
  %v1078 = vadd.f32 %v1054, %v1068
  %v1079 = vadd.f32 %v1055, %v1068
  %v1080 = vadd.f32 %v1056, %v1068
  %v1081 = vadd.f32 %v1057, %v1068
  %v1082 = vadd.f32 %v1058, %v1072
  %v1083 = vadd.f32 %v1059, %v1072
  %v1084 = vadd.f32 %v1060, %v1072
  %v1085 = vadd.f32 %v1061, %v1072
  %v1086 = vadd.f32 %v1062, %v1076
  %v1087 = vadd.f32 %v1063, %v1076
  %v1088 = vadd.f32 %v1064, %v1076
  %v1089 = vadd.f32 %v1065, %v1076
  %vm1090 = vcmp.gt.f32.partialorder %v1078, 0.0
  %vm1091 = vcmp.gt.f32.partialorder %v1079, 0.0
  %vm1092 = vcmp.gt.f32.partialorder %v1080, 0.0
  %vm1093 = vcmp.gt.f32.partialorder %v1081, 0.0
  %vm1094 = vcmp.gt.f32.partialorder %v1082, 0.0
  %vm1095 = vcmp.gt.f32.partialorder %v1083, 0.0
  %vm1096 = vcmp.gt.f32.partialorder %v1084, 0.0
  %vm1097 = vcmp.gt.f32.partialorder %v1085, 0.0
  %vm1098 = vcmp.gt.f32.partialorder %v1086, 0.0
  %vm1099 = vcmp.gt.f32.partialorder %v1087, 0.0
  %vm1100 = vcmp.gt.f32.partialorder %v1088, 0.0
  %vm1101 = vcmp.gt.f32.partialorder %v1089, 0.0
  %v1102 = vmul.f32 %v1078, 0.01
  %v1103 = vmul.f32 %v1079, 0.01
  %v1104 = vmul.f32 %v1080, 0.01
  %v1105 = vmul.f32 %v1081, 0.01
  %v1106 = vmul.f32 %v1082, 0.01
  %v1107 = vmul.f32 %v1083, 0.01
  %v1108 = vmul.f32 %v1084, 0.01
  %v1109 = vmul.f32 %v1085, 0.01
  %v1110 = vmul.f32 %v1086, 0.01
  %v1111 = vmul.f32 %v1087, 0.01
  %v1112 = vmul.f32 %v1088, 0.01
  %v1113 = vmul.f32 %v1089, 0.01
  %v1114 = vsel %vm1090, %v1078, %v1102
  %v1115 = vsel %vm1091, %v1079, %v1103
  %v1116 = vsel %vm1092, %v1080, %v1104
  %v1117 = vsel %vm1093, %v1081, %v1105
  %v1118 = vsel %vm1094, %v1082, %v1106
  %v1119 = vsel %vm1095, %v1083, %v1107
  %v1120 = vsel %vm1096, %v1084, %v1108
  %v1121 = vsel %vm1097, %v1085, %v1109
  %v1122 = vsel %vm1098, %v1086, %v1110
  %v1123 = vsel %vm1099, %v1087, %v1111
  %v1124 = vsel %vm1100, %v1088, %v1112
  %v1125 = vsel %vm1101, %v1089, %v1113
  %v1126 = vadd.f32 %v1114, %v1115
  %1127 = vadd.xlane.f32.xlu0 %v1126
  %v1128 = vpop.xlane.xlu0 %1127
  %v1129 = vadd.f32 %v1118, %v1119
  %1130 = vadd.xlane.f32.xlu0 %v1129
  %v1131 = vpop.xlane.xlu0 %1130
  %v1132 = vadd.f32 %v1122, %v1123
  %1133 = vadd.xlane.f32.xlu0 %v1132
  %v1134 = vpop.xlane.xlu0 %1133
  %v1135 = vrcp.pop 256.0
  %v1136 = vmul.f32 %v1128, %v1135
  %v1137 = vmul.f32 %v1131, %v1135
  %v1138 = vmul.f32 %v1134, %v1135
  %v1139 = vadd.f32 %v1116, %v1117
  %1140 = vadd.xlane.f32.xlu0 %v1139
  %v1141 = vpop.xlane.xlu0 %1140
  %v1142 = vadd.f32 %v1120, %v1121
  %1143 = vadd.xlane.f32.xlu0 %v1142
  %v1144 = vpop.xlane.xlu0 %1143
  %v1145 = vadd.f32 %v1124, %v1125
  %1146 = vadd.xlane.f32.xlu0 %v1145
  %v1147 = vpop.xlane.xlu0 %1146
  %v1148 = vmul.f32 %v1141, %v1135
  %v1149 = vmul.f32 %v1144, %v1135
  %v1150 = vmul.f32 %v1147, %v1135
  %vm1151 = vcmask 7168
  %v1152 = vsel %vm1151, %v1136, %v1148
  %v1153 = vsel %vm1151, %v1137, %v1149
  %v1154 = vsel %vm1151, %v1138, %v1150
  %v1155 = vld [vmem:[%s3] sm:$0x7]
  %1156 = vset.pattern.permute.xlu0 5
  %1157 = vperm.xlu0 %1156, %v1036
  %v1158 = vpop.permute.xlu0 %1157
  %vm1160 = vcmask 195584
  %v1162 = vsel %vm1160, %v1155, 0
  %1164 = vmatprep.subr.mxu0 0.0
  %1165 = vmatpush1.msra.mxu0 0.0
  %1166 = vmatprep.subr.mxu0 0.0
  %1167 = vmatpush1.msra.mxu0 0.0
  %1168 = vmatprep.subr.mxu0 0.0
  %1169 = vmatpush1.msra.mxu0 0.0
  %1170 = vmatprep.subr.mxu0 0.0
  %1171 = vmatpush1.msra.mxu0 0.0
  %1172 = vmatprep.subr.mxu0 0.0
  %1173 = vmatpush1.msra.mxu0 0.0
  %1174 = vmatprep.subr.mxu0 0.0
  %1175 = vmatpush1.msra.mxu0 0.0
  %1176 = vmatprep.subr.mxu0 0.0
  %1177 = vmatpush1.msra.mxu0 0.0
  %1178 = vmatprep.subr.mxu0 0.0
  %1179 = vmatpush1.msra.mxu0 0.0
  %1180 = vmatprep.subr.mxu0 0.0
  %1181 = vmatpush1.msra.mxu0 0.0
  %1182 = vmatprep.subr.mxu0 0.0
  %1183 = vmatpush1.msra.mxu0 0.0
  %1184 = vmatprep.subr.mxu0 0.0
  %1185 = vmatpush1.msra.mxu0 0.0
  %1186 = vmatprep.subr.mxu0 0.0
  %1187 = vmatpush1.msra.mxu0 0.0
  %1188 = vmatprep.subr.mxu0 0.0
  %1189 = vmatpush1.msra.mxu0 0.0
  %1190 = vmatprep.subr.mxu0 0.0
  %1191 = vmatpush1.msra.mxu0 %v1154
  %1192 = vmatprep.subr.mxu0 0.0
  %1193 = vmatpush1.msra.mxu0 %v1153
  %1194 = vmatprep.subr.mxu0 0.0
  %1195 = vmatpush1.msra.mxu0 %v1152
  %1196 = vmatprep.subr.mxu0 0.0
  %1197 = vmatpush2.msra.mxu0 0.0
  %1198 = vmatprep.subr.mxu0 0.0
  %1199 = vmatpush2.msra.mxu0 0.0
  %1200 = vmatprep.subr.mxu0 0.0
  %1201 = vmatpush2.msra.mxu0 0.0
  %1202 = vmatprep.subr.mxu0 0.0
  %1203 = vmatpush2.msra.mxu0 0.0
  %1204 = vmatprep.subr.mxu0 0.0
  %1205 = vmatpush2.msra.mxu0 0.0
  %1206 = vmatprep.subr.mxu0 0.0
  %1207 = vmatpush2.msra.mxu0 0.0
  %1208 = vmatprep.subr.mxu0 0.0
  %1209 = vmatpush2.msra.mxu0 0.0
  %1210 = vmatprep.subr.mxu0 0.0
  %1211 = vmatpush2.msra.mxu0 0.0
  %1212 = vmatprep.subr.mxu0 0.0
  %1213 = vmatpush2.msra.mxu0 0.0
  %1214 = vmatprep.subr.mxu0 0.0
  %1215 = vmatpush2.msra.mxu0 0.0
  %1216 = vmatprep.subr.mxu0 0.0
  %1217 = vmatpush2.msra.mxu0 0.0
  %1218 = vmatprep.subr.mxu0 0.0
  %1219 = vmatpush2.msra.mxu0 0.0
  %1220 = vmatprep.subr.mxu0 0.0
  %1221 = vmatpush2.msra.mxu0 0.0
  %1222 = vmatprep.subr.mxu0 0.0
  %1223 = vmatpush2.msra.mxu0 0.0
  %1224 = vmatprep.subr.mxu0 0.0
  %1225 = vmatpush2.msra.mxu0 0.0
  %1226 = vmatprep.subr.mxu0 0.0
  %1227 = vmatpush2.msra.mxu0 0.0
  %1228 = vmatprep.mubr.f32.mxu0 0.0
  %1229 = vmatmul.mubr.f32.gmra.mxu0 %v1162
  %v1230 = vpop.f32.mrf.mxu0
  %v1231 = vadd.f32 %v1158, %v1230
  %v1232 = vpop.f32.mrf.mxu0
  %1233 = vdwg.mxu0
  %vm1234 = vcmp.gt.f32.partialorder %v1231, 0.0
  %v1235 = vmul.f32 %v1231, 0.01
  %v1236 = vsel %vm1234, %v1231, %v1235
  %v1237 = vld [vmem:[%s4] sm:$0xff]
  %v1238 = vld [vmem:[%s4 + $0x8] sm:$0xff]
  %v1239 = vld [vmem:[%s4 + $0x10] sm:$0xff]
  %1240 = vset.pattern.permute.xlu0 4
  %1241 = vperm.xlu0 %1240, %v1036
  %v1242 = vpop.permute.xlu0 %1241
  %1244 = vset.pattern.permute.xlu0 4
  %1245 = vperm.xlu0 %1244, %v1037
  %v1246 = vpop.permute.xlu0 %1245
  %1248 = vset.pattern.permute.xlu0 4
  %1249 = vperm.xlu0 %1248, %v1038
  %v1250 = vpop.permute.xlu0 %1249
  %vm1252 = vcmask 23552
  %v1254 = vsel %vm1252, %v1237, 0
  %v1257 = vsel %vm1252, %v1238, 0
  %v1260 = vsel %vm1252, %v1239, 0
  %vm1262 = vcmask 1042432
  %v1264 = vsel %vm1262, %v1236, 0
  %1266 = vmatprep.subr.mxu0 0.0
  %1267 = vmatpush1.msra.mxu0 0.0
  %1268 = vmatprep.subr.mxu0 0.0
  %1269 = vmatpush1.msra.mxu0 0.0
  %1270 = vmatprep.subr.mxu0 0.0
  %1271 = vmatpush1.msra.mxu0 0.0
  %1272 = vmatprep.subr.mxu0 0.0
  %1273 = vmatpush1.msra.mxu0 0.0
  %1274 = vmatprep.subr.mxu0 0.0
  %1275 = vmatpush1.msra.mxu0 0.0
  %1276 = vmatprep.subr.mxu0 0.0
  %1277 = vmatpush1.msra.mxu0 0.0
  %1278 = vmatprep.subr.mxu0 0.0
  %1279 = vmatpush1.msra.mxu0 0.0
  %1280 = vmatprep.subr.mxu0 0.0
  %1281 = vmatpush1.msra.mxu0 0.0
  %1282 = vmatprep.subr.mxu0 0.0
  %1283 = vmatpush1.msra.mxu0 0.0
  %1284 = vmatprep.subr.mxu0 0.0
  %1285 = vmatpush1.msra.mxu0 0.0
  %1286 = vmatprep.subr.mxu0 0.0
  %1287 = vmatpush1.msra.mxu0 0.0
  %1288 = vmatprep.subr.mxu0 0.0
  %1289 = vmatpush1.msra.mxu0 0.0
  %1290 = vmatprep.subr.mxu0 0.0
  %1291 = vmatpush1.msra.mxu0 0.0
  %1292 = vmatprep.subr.mxu0 0.0
  %1293 = vmatpush1.msra.mxu0 0.0
  %1294 = vmatprep.subr.mxu0 0.0
  %1295 = vmatpush1.msra.mxu0 0.0
  %1296 = vmatprep.subr.mxu0 0.0
  %1297 = vmatpush1.msra.mxu0 %v1264
  %1298 = vmatprep.subr.mxu0 0.0
  %1299 = vmatpush2.msra.mxu0 0.0
  %1300 = vmatprep.subr.mxu0 0.0
  %1301 = vmatpush2.msra.mxu0 0.0
  %1302 = vmatprep.subr.mxu0 0.0
  %1303 = vmatpush2.msra.mxu0 0.0
  %1304 = vmatprep.subr.mxu0 0.0
  %1305 = vmatpush2.msra.mxu0 0.0
  %1306 = vmatprep.subr.mxu0 0.0
  %1307 = vmatpush2.msra.mxu0 0.0
  %1308 = vmatprep.subr.mxu0 0.0
  %1309 = vmatpush2.msra.mxu0 0.0
  %1310 = vmatprep.subr.mxu0 0.0
  %1311 = vmatpush2.msra.mxu0 0.0
  %1312 = vmatprep.subr.mxu0 0.0
  %1313 = vmatpush2.msra.mxu0 0.0
  %1314 = vmatprep.subr.mxu0 0.0
  %1315 = vmatpush2.msra.mxu0 0.0
  %1316 = vmatprep.subr.mxu0 0.0
  %1317 = vmatpush2.msra.mxu0 0.0
  %1318 = vmatprep.subr.mxu0 0.0
  %1319 = vmatpush2.msra.mxu0 0.0
  %1320 = vmatprep.subr.mxu0 0.0
  %1321 = vmatpush2.msra.mxu0 0.0
  %1322 = vmatprep.subr.mxu0 0.0
  %1323 = vmatpush2.msra.mxu0 0.0
  %1324 = vmatprep.subr.mxu0 0.0
  %1325 = vmatpush2.msra.mxu0 0.0
  %1326 = vmatprep.subr.mxu0 0.0
  %1327 = vmatpush2.msra.mxu0 0.0
  %1328 = vmatprep.subr.mxu0 0.0
  %1329 = vmatpush2.msra.mxu0 0.0
  %1330 = vmatprep.mubr.f32.mxu0 0.0
  %1331 = vmatmul.mubr.f32.gmra.mxu0 %v1254
  %v1332 = vpop.f32.mrf.mxu0
  %v1333 = vadd.f32 %v1242, %v1332
  %v1334 = vpop.f32.mrf.mxu0
  %1335 = vmatprep.mubr.f32.mxu0 0.0
  %1336 = vmatmul.mubr.f32.gmra.mxu0 %v1257
  %v1337 = vpop.f32.mrf.mxu0
  %v1338 = vadd.f32 %v1246, %v1337
  %v1339 = vpop.f32.mrf.mxu0
  %1340 = vmatprep.mubr.f32.mxu0 0.0
  %1341 = vmatmul.mubr.f32.gmra.mxu0 %v1260
  %v1342 = vpop.f32.mrf.mxu0
  %v1343 = vadd.f32 %v1250, %v1342
  %v1344 = vpop.f32.mrf.mxu0
  %1345 = vdwg.mxu0
  %v1346 = vxor.u32 %v1333, 2147483648
  %v1347 = vxor.u32 %v1338, 2147483648
  %v1348 = vxor.u32 %v1343, 2147483648
  %v1349 = vmul.f32 %v1346, 1.442695
  %v1350 = vpow.pop %v1349
  %v1351 = vmul.f32 %v1347, 1.442695
  %v1352 = vpow.pop %v1351
  %v1353 = vmul.f32 %v1348, 1.442695
  %v1354 = vpow.pop %v1353
  %v1355 = vadd.f32 %v1350, 1.0
  %v1356 = vadd.f32 %v1352, 1.0
  %v1357 = vadd.f32 %v1354, 1.0
  %v1358 = vrcp.pop %v1355
  %v1359 = vmul.f32 1.0, %v1358
  %v1360 = vrcp.pop %v1356
  %v1361 = vmul.f32 1.0, %v1360
  %v1362 = vrcp.pop %v1357
  %v1363 = vmul.f32 1.0, %v1362
  %1365 = vset.pattern.permute.xlu0 0
  %1366 = vperm.xlu0 %1365, %v1359
  %v1367 = vpop.permute.xlu0 %1366
  %1370 = vset.pattern.permute.xlu0 0
  %1371 = vperm.xlu0 %1370, %v1361
  %v1372 = vpop.permute.xlu0 %1371
  %1375 = vset.pattern.permute.xlu0 0
  %1376 = vperm.xlu0 %1375, %v1363
  %v1377 = vpop.permute.xlu0 %1376
  %v1379 = vmul.f32 %v1114, %v1367
  %v1380 = vmul.f32 %v1115, %v1367
  %v1381 = vmul.f32 %v1118, %v1372
  %v1382 = vmul.f32 %v1119, %v1372
  %v1383 = vmul.f32 %v1122, %v1377
  %v1384 = vmul.f32 %v1123, %v1377
  %1385 = vset.pattern.permute.xlu0 2
  %1386 = vperm.xlu0 %1385, %v1036
  %v1387 = vpop.permute.xlu0 %1386
  %1389 = vset.pattern.permute.xlu0 2
  %1390 = vperm.xlu0 %1389, %v1037
  %v1391 = vpop.permute.xlu0 %1390
  %1393 = vset.pattern.permute.xlu0 2
  %1394 = vperm.xlu0 %1393, %v1038
  %v1395 = vpop.permute.xlu0 %1394
  %v1397 = vmul.f32 %v1379, %v1387
  %v1398 = vmul.f32 %v1380, %v1387
  %v1399 = vmul.f32 %v1381, %v1391
  %v1400 = vmul.f32 %v1382, %v1391
  %v1401 = vmul.f32 %v1383, %v1395
  %v1402 = vmul.f32 %v1384, %v1395
  %1403 = vset.pattern.permute.xlu0 3
  %1404 = vperm.xlu0 %1403, %v1036
  %v1405 = vpop.permute.xlu0 %1404
  %1407 = vset.pattern.permute.xlu0 3
  %1408 = vperm.xlu0 %1407, %v1037
  %v1409 = vpop.permute.xlu0 %1408
  %1411 = vset.pattern.permute.xlu0 3
  %1412 = vperm.xlu0 %1411, %v1038
  %v1413 = vpop.permute.xlu0 %1412
  %v1415 = vadd.f32 %v1397, %v1405
  %v1416 = vadd.f32 %v1398, %v1405
  %v1417 = vadd.f32 %v1399, %v1409
  %v1418 = vadd.f32 %v1400, %v1409
  %v1419 = vadd.f32 %v1401, %v1413
  %v1420 = vadd.f32 %v1402, %v1413
  %vm1421 = vcmp.gt.f32.partialorder %v1415, 0.0
  %vm1422 = vcmp.gt.f32.partialorder %v1416, 0.0
  %vm1423 = vcmp.gt.f32.partialorder %v1417, 0.0
  %vm1424 = vcmp.gt.f32.partialorder %v1418, 0.0
  %vm1425 = vcmp.gt.f32.partialorder %v1419, 0.0
  %vm1426 = vcmp.gt.f32.partialorder %v1420, 0.0
  %v1427 = vmul.f32 %v1415, 0.01
  %v1428 = vmul.f32 %v1416, 0.01
  %v1429 = vmul.f32 %v1417, 0.01
  %v1430 = vmul.f32 %v1418, 0.01
  %v1431 = vmul.f32 %v1419, 0.01
  %v1432 = vmul.f32 %v1420, 0.01
  %v1433 = vsel %vm1421, %v1415, %v1427
  %v1434 = vsel %vm1422, %v1416, %v1428
  %v1435 = vsel %vm1423, %v1417, %v1429
  %v1436 = vsel %vm1424, %v1418, %v1430
  %v1437 = vsel %vm1425, %v1419, %v1431
  %v1438 = vsel %vm1426, %v1420, %v1432
  %v1439 = vpack.c.bf16 %v1435, %v1433
  %v1440 = vpack.c.bf16 %v1436, %v1434
  %v1441 = vpack.c.bf16 %v1437, %v1437
  %v1442 = vpack.c.bf16 %v1438, %v1438
  %v1447 = vunpack.c.l.b16 %v1439
  %v1448 = vunpack.c.l.b16 %v1440
  %v1449 = vunpack.c.h.b16 %v1439
  %v1450 = vunpack.c.h.b16 %v1440
  %v1451 = vunpack.c.l.b16 %v1441
  %v1452 = vunpack.c.l.b16 %v1442
  %v1453 = vpack.c.b16 %v1448, %v1447
  %v1454 = vpack.c.b16 %v1450, %v1449
  %v1455 = vpack.c.b16 %v1452, %v1451
  %1459 = vst [vmem:[%s5] sm:$0xff] %v1453
  %1460 = vst [vmem:[%s5 + $0x8] sm:$0xff] %v1454
  %1461 = vst [vmem:[%s5 + $0x10] sm:$0xff] %v1455
  %1462 = vset.pattern.permute.xlu0 1
  %1463 = vperm.xlu0 %1462, %v1359
  %v1464 = vpop.permute.xlu0 %1463
  %1466 = vset.pattern.permute.xlu0 1
  %1467 = vperm.xlu0 %1466, %v1361
  %v1468 = vpop.permute.xlu0 %1467
  %1470 = vset.pattern.permute.xlu0 1
  %1471 = vperm.xlu0 %1470, %v1363
  %v1472 = vpop.permute.xlu0 %1471
  %v1474 = vmul.f32 %v1116, %v1464
  %v1475 = vmul.f32 %v1117, %v1464
  %v1476 = vmul.f32 %v1120, %v1468
  %v1477 = vmul.f32 %v1121, %v1468
  %v1478 = vmul.f32 %v1124, %v1472
  %v1479 = vmul.f32 %v1125, %v1472
  %v1480 = vmul.f32 %v1474, %v1387
  %v1481 = vmul.f32 %v1475, %v1387
  %v1482 = vmul.f32 %v1476, %v1391
  %v1483 = vmul.f32 %v1477, %v1391
  %v1484 = vmul.f32 %v1478, %v1395
  %v1485 = vmul.f32 %v1479, %v1395
  %v1486 = vadd.f32 %v1480, %v1405
  %v1487 = vadd.f32 %v1481, %v1405
  %v1488 = vadd.f32 %v1482, %v1409
  %v1489 = vadd.f32 %v1483, %v1409
  %v1490 = vadd.f32 %v1484, %v1413
  %v1491 = vadd.f32 %v1485, %v1413
  %vm1492 = vcmp.gt.f32.partialorder %v1486, 0.0
  %vm1493 = vcmp.gt.f32.partialorder %v1487, 0.0
  %vm1494 = vcmp.gt.f32.partialorder %v1488, 0.0
  %vm1495 = vcmp.gt.f32.partialorder %v1489, 0.0
  %vm1496 = vcmp.gt.f32.partialorder %v1490, 0.0
  %vm1497 = vcmp.gt.f32.partialorder %v1491, 0.0
  %v1498 = vmul.f32 %v1486, 0.01
  %v1499 = vmul.f32 %v1487, 0.01
  %v1500 = vmul.f32 %v1488, 0.01
  %v1501 = vmul.f32 %v1489, 0.01
  %v1502 = vmul.f32 %v1490, 0.01
  %v1503 = vmul.f32 %v1491, 0.01
  %v1504 = vsel %vm1492, %v1486, %v1498
  %v1505 = vsel %vm1493, %v1487, %v1499
  %v1506 = vsel %vm1494, %v1488, %v1500
  %v1507 = vsel %vm1495, %v1489, %v1501
  %v1508 = vsel %vm1496, %v1490, %v1502
  %v1509 = vsel %vm1497, %v1491, %v1503
  %v1510 = vpack.c.bf16 %v1506, %v1504
  %v1511 = vpack.c.bf16 %v1507, %v1505
  %v1512 = vpack.c.bf16 %v1508, %v1508
  %v1513 = vpack.c.bf16 %v1509, %v1509
  %v1518 = vunpack.c.l.b16 %v1510
  %v1519 = vunpack.c.l.b16 %v1511
  %v1520 = vunpack.c.h.b16 %v1510
  %v1521 = vunpack.c.h.b16 %v1511
  %v1522 = vunpack.c.l.b16 %v1512
  %v1523 = vunpack.c.l.b16 %v1513
  %v1524 = vpack.c.b16 %v1519, %v1518
  %v1525 = vpack.c.b16 %v1521, %v1520
  %v1526 = vpack.c.b16 %v1523, %v1522
  %s1530 = scalar_lea.vmem %s5, 24
  %1531 = vst [vmem:[%s1530] sm:$0xff] %v1524
  %1532 = vst [vmem:[%s1530 + $0x8] sm:$0xff] %v1525
  %1533 = vst [vmem:[%s1530 + $0x10] sm:$0xff] %v1526
  // Predicated region
  $region22: #{conv2d_batchnorm_forward.1} parent=0 // pred_check
    _
  $region23: #{conv2d_batchnorm_forward.1} parent=0 // pred_check_branch
    %1535 = sbr.rel (0) target = $region25
  $region24: #{conv2d_batchnorm_forward.1} parent=0 // pred_region
    _
  $region25: #{conv2d_batchnorm_forward.1} parent=0 // pred_fallthru
    _
  // Predicated region
  $region26: #{conv2d_batchnorm_forward.1} parent=0 // pred_check
    _
  $region27: #{conv2d_batchnorm_forward.1} parent=0 // pred_check_branch
    %1537 = sbr.rel (0) target = $region29
  $region28: #{conv2d_batchnorm_forward.1} parent=0 // pred_region
    _
  $region29: #{conv2d_batchnorm_forward.1} parent=0 // pred_fallthru
    _

</llo_original>
